<compile_context>
chip_gen: v5e
topology: v5e:2x2
jax: 0.10.0
libtpu: 0.0.40
codegen_flags: <defaults>
</compile_context>

<pallas_src>
import functools

import jax
import jax.numpy as jnp
from jax.experimental import pallas as pl
from jax.experimental.pallas import tpu as pltpu


def _prepend_prompt_kernel(ids_ref, prompt_hbm, shared_hbm, out_hbm, sems,
                           *, num_prompt_tokens, seq_len, n_inflight):
    """One batch row per grid step.

    ids_ref:    (B, S) int32 in SMEM (scalar-prefetched token ids).
    prompt_hbm: (P, D) HBM — trainable prompt embeddings (memory_space=ANY).
    shared_hbm: (V, D) HBM — frozen vocabulary table (memory_space=ANY).
    out_hbm:    (B, P+S, D) HBM — output (memory_space=ANY), written by DMA.
    sems:       (n_inflight + 1,) DMA semaphores; slots [0, n_inflight) are
                the rolling row-gather window, slot n_inflight is the prompt
                block copy.
    """
    b = pl.program_id(0)
    P = num_prompt_tokens
    S = seq_len
    m = n_inflight  # power of two (asserted in the wrapper)

    # 1) Prompt rows: one (P, D) HBM->HBM DMA into rows [0, P) of batch b.
    prompt_copy = pltpu.make_async_copy(
        prompt_hbm, out_hbm.at[b, pl.ds(0, P), :], sems.at[m])
    prompt_copy.start()

    # 2) Token rows: rolling-window per-row HBM->HBM DMA gather
    #    shared[ids[b, s]] -> out[b, P + s].
    def start_row(s):
        tok = ids_ref[b, s]
        pltpu.make_async_copy(
            shared_hbm.at[pl.ds(tok, 1), :],
            out_hbm.at[b, pl.ds(P + s, 1), :],
            sems.at[s & (m - 1)]).start()

    def wait_slot(slot):
        # Every row copy moves exactly D * itemsize bytes, so waiting with a
        # fixed representative descriptor is equivalent — and avoids the SMEM
        # id re-read + token-dependent address math of rebuilding the real one.
        pltpu.make_async_copy(
            shared_hbm.at[pl.ds(0, 1), :],
            out_hbm.at[b, pl.ds(P, 1), :],
            sems.at[slot]).wait()

    n_pro = min(m, S)

    # Prologue: fill the window (static, fully unrolled; no predicate).
    for s in range(n_pro):
        start_row(s)

    # Steady state: unconditional wait-then-start.  This loop has no MXU/VPU
    # work — it is scalar / descriptor-issue bound — so unroll it to let the
    # scheduler co-issue scalar ops across rows.
    if S > n_pro:
        def steady(s, carry):
            wait_slot(s & (m - 1))
            start_row(s)
            return carry

        jax.lax.fori_loop(n_pro, S, steady, 0,
                          unroll=min(8, S - n_pro))

    # Drain the remaining in-flight row copies (static, fully unrolled).
    for s in range(S - n_pro, S):
        wait_slot(s & (m - 1))

    prompt_copy.wait()


def prompt_tuning_prepend(input_ids, attention_mask,
                          prompt_embeddings, shared_embeddings,
                          *, n_inflight=16):
    """JAX wrapper reproducing PromptTuningModel._prepend_prompt.

    Returns (input_embeds, input_attention_mask) exactly like the PyTorch
    module: input_embeds = concat([prompt_embeds (broadcast over batch),
    shared[input_ids]], axis=1).
    """
    B, S = input_ids.shape
    P, D = prompt_embeddings.shape
    V, D2 = shared_embeddings.shape
    assert D == D2, "prompt / vocab d_model mismatch"
    T = P + S

    dtype = shared_embeddings.dtype
    # Note: the trainable prompt is cast to the frozen table's dtype so the
    # concatenated output has a single dtype (slight numerics change vs
    # concatenating a float32 prompt with a bf16 table).
    prompt = prompt_embeddings.astype(dtype)

    # Attention-mask prepend: trivial int concat, kept in plain JAX.
    if attention_mask is not None:
        prompt_mask = jnp.ones((B, P), attention_mask.dtype)
        out_mask = jnp.concatenate([prompt_mask, attention_mask], axis=1)
    else:
        out_mask = None

    if S == 0:  # degenerate: nothing to gather.
        return jnp.broadcast_to(prompt[None], (B, P, D)), out_mask

    # Clamp ids (matches jnp.take's clamp semantics; PyTorch nn.Embedding
    # would raise on out-of-range ids — documented behavioral difference).
    ids = jnp.clip(input_ids.astype(jnp.int32), 0, V - 1)

    # Power-of-two in-flight window (slot = s & (m - 1) in the hot loop).
    n_inflight = max(1, int(n_inflight))
    if n_inflight & (n_inflight - 1):
        n_inflight = 1 << n_inflight.bit_length()
    n_inflight = min(n_inflight, 128)

    kernel = functools.partial(_prepend_prompt_kernel,
                               num_prompt_tokens=P, seq_len=S,
                               n_inflight=n_inflight)

    embeds = pl.pallas_call(
        kernel,
        grid_spec=pltpu.PrefetchScalarGridSpec(
            num_scalar_prefetch=1,                 # ids -> SMEM
            grid=(B,),
            in_specs=[
                pl.BlockSpec(memory_space=pl.ANY),   # prompt table (HBM)
                pl.BlockSpec(memory_space=pl.ANY),   # vocab table (HBM)
            ],
            out_specs=pl.BlockSpec(memory_space=pl.ANY),  # output (HBM)
            scratch_shapes=[
                pltpu.SemaphoreType.DMA((n_inflight + 1,)),
            ],
        ),
        out_shape=jax.ShapeDtypeStruct((B, T, D), dtype),
        compiler_params=pltpu.CompilerParams(
            dimension_semantics=("parallel",)),
    )(ids, prompt, shared_embeddings)

    return embeds, out_mask


if __name__ == "__main__":
    # Small, forward-consistent shapes (S chosen > default window so the
    # prologue, steady-state and drain paths all run).
    B, S = 2, 24             # batch, input sequence length
    P = 8                    # num_prompt_tokens
    D = 32                   # d_model
    V = 64                   # vocab_size of the (synthetic) base model

    key = jax.random.PRNGKey(0)
    k_prompt, k_shared, k_ids = jax.random.split(key, 3)

    # Deterministic "parameters": prompt_embeddings ~ N(0, initializer_factor),
    # base_model.shared ~ N(0, 1) (synthetic, not a checkpoint load).
    initializer_factor = 1.0
    prompt_embeddings = (initializer_factor *
                         jax.random.normal(k_prompt, (P, D), jnp.float32))
    shared_embeddings = jax.random.normal(k_shared, (V, D), jnp.float32)

    input_ids = jax.random.randint(k_ids, (B, S), 0, V, dtype=jnp.int32)
    # Mask: ones with a padded tail on one row (realistic attention mask).
    attention_mask = jnp.ones((B, S), jnp.int32).at[1, S - 2:].set(0)

    input_embeds, input_attention_mask = jax.block_until_ready(
        prompt_tuning_prepend(input_ids, attention_mask,
                              prompt_embeddings, shared_embeddings))

    # Pure-JAX reference for correctness.
    ref_prompt = jnp.broadcast_to(prompt_embeddings[None], (B, P, D))
    ref_tokens = jnp.take(shared_embeddings, input_ids, axis=0)
    ref_embeds = jnp.concatenate([ref_prompt, ref_tokens], axis=1)
    ref_mask = jnp.concatenate(
        [jnp.ones((B, P), jnp.int32), attention_mask], axis=1)

    assert input_embeds.shape == (B, P + S, D)
    assert input_attention_mask.shape == (B, P + S)
    assert jnp.allclose(input_embeds, ref_embeds, atol=1e-6, rtol=1e-6)
    assert jnp.array_equal(input_attention_mask, ref_mask)

    print("KERNEL_OK")
</pallas_src>

<mosaic_0001>
module attributes {stable_mosaic.version = 11 : i64} {
  func.func @_prepend_prompt_kernel(%arg0: i32, %arg1: memref<2x24xi32, #tpu.memory_space<smem>>, %arg2: memref<8x32xf32, #tpu.memory_space<any>>, %arg3: memref<64x32xf32, #tpu.memory_space<any>>, %arg4: memref<2x32x32xf32, #tpu.memory_space<any>>, %arg5: memref<17x!tpu.dma_semaphore, #tpu.memory_space<semaphore_mem>>) attributes {dimension_semantics = [#tpu.dimension_semantics<parallel>], iteration_bounds = array<i64: 2>, scalar_prefetch = 1 : i64, scratch_operands = 1 : i64, tpu.core_type = #tpu.core_type<tc>, window_params = [{}, {}, {}]} {
    %c16_i32 = arith.constant 16 : i32
    %c0_i32 = arith.constant 0 : i32
    %c0_i32_0 = arith.constant 0 : i32
    %0 = tpu.memref_slice %arg4[%arg0, %c0_i32, %c0_i32_0] : memref<2x32x32xf32, #tpu.memory_space<any>> -> memref<1x8x32xf32, #tpu.memory_space<any>>
    %1 = tpu.memref_squeeze %0 : memref<1x8x32xf32, #tpu.memory_space<any>> -> memref<8x32xf32, #tpu.memory_space<any>>
    %2 = tpu.memref_slice %arg5[%c16_i32] : memref<17x!tpu.dma_semaphore, #tpu.memory_space<semaphore_mem>> -> memref<1x!tpu.dma_semaphore, #tpu.memory_space<semaphore_mem>>
    %3 = tpu.memref_squeeze %2 : memref<1x!tpu.dma_semaphore, #tpu.memory_space<semaphore_mem>> -> memref<!tpu.dma_semaphore, #tpu.memory_space<semaphore_mem>>
    tpu.enqueue_dma source(%arg2 : memref<8x32xf32, #tpu.memory_space<any>>) target(%1 : memref<8x32xf32, #tpu.memory_space<any>>) target_semaphore(%3 : memref<!tpu.dma_semaphore, #tpu.memory_space<semaphore_mem>>)
    %4 = arith.index_cast %arg0 : i32 to index
    %c0 = arith.constant 0 : index
    %5 = memref.load %arg1[%4, %c0] : memref<2x24xi32, #tpu.memory_space<smem>>
    %c0_i32_1 = arith.constant 0 : i32
    %c0_i32_2 = arith.constant 0 : i32
    %6 = tpu.memref_slice %arg3[%5, %c0_i32_2] : memref<64x32xf32, #tpu.memory_space<any>> -> memref<1x32xf32, #tpu.memory_space<any>>
    %c8_i32 = arith.constant 8 : i32
    %c0_i32_3 = arith.constant 0 : i32
    %7 = tpu.memref_slice %arg4[%arg0, %c8_i32, %c0_i32_3] : memref<2x32x32xf32, #tpu.memory_space<any>> -> memref<1x1x32xf32, #tpu.memory_space<any>>
    %8 = tpu.memref_squeeze %7 : memref<1x1x32xf32, #tpu.memory_space<any>> -> memref<1x32xf32, #tpu.memory_space<any>>
    %9 = tpu.memref_slice %arg5[%c0_i32_1] : memref<17x!tpu.dma_semaphore, #tpu.memory_space<semaphore_mem>> -> memref<1x!tpu.dma_semaphore, #tpu.memory_space<semaphore_mem>>
    %10 = tpu.memref_squeeze %9 : memref<1x!tpu.dma_semaphore, #tpu.memory_space<semaphore_mem>> -> memref<!tpu.dma_semaphore, #tpu.memory_space<semaphore_mem>>
    tpu.enqueue_dma source(%6 : memref<1x32xf32, #tpu.memory_space<any>>) target(%8 : memref<1x32xf32, #tpu.memory_space<any>>) target_semaphore(%10 : memref<!tpu.dma_semaphore, #tpu.memory_space<semaphore_mem>>)
    %11 = arith.index_cast %arg0 : i32 to index
    %c1 = arith.constant 1 : index
    %12 = memref.load %arg1[%11, %c1] : memref<2x24xi32, #tpu.memory_space<smem>>
    %c1_i32 = arith.constant 1 : i32
    %c0_i32_4 = arith.constant 0 : i32
    %13 = tpu.memref_slice %arg3[%12, %c0_i32_4] : memref<64x32xf32, #tpu.memory_space<any>> -> memref<1x32xf32, #tpu.memory_space<any>>
    %c9_i32 = arith.constant 9 : i32
    %c0_i32_5 = arith.constant 0 : i32
    %14 = tpu.memref_slice %arg4[%arg0, %c9_i32, %c0_i32_5] : memref<2x32x32xf32, #tpu.memory_space<any>> -> memref<1x1x32xf32, #tpu.memory_space<any>>
    %15 = tpu.memref_squeeze %14 : memref<1x1x32xf32, #tpu.memory_space<any>> -> memref<1x32xf32, #tpu.memory_space<any>>
    %16 = tpu.memref_slice %arg5[%c1_i32] : memref<17x!tpu.dma_semaphore, #tpu.memory_space<semaphore_mem>> -> memref<1x!tpu.dma_semaphore, #tpu.memory_space<semaphore_mem>>
    %17 = tpu.memref_squeeze %16 : memref<1x!tpu.dma_semaphore, #tpu.memory_space<semaphore_mem>> -> memref<!tpu.dma_semaphore, #tpu.memory_space<semaphore_mem>>
    tpu.enqueue_dma source(%13 : memref<1x32xf32, #tpu.memory_space<any>>) target(%15 : memref<1x32xf32, #tpu.memory_space<any>>) target_semaphore(%17 : memref<!tpu.dma_semaphore, #tpu.memory_space<semaphore_mem>>)
    %18 = arith.index_cast %arg0 : i32 to index
    %c2 = arith.constant 2 : index
    %19 = memref.load %arg1[%18, %c2] : memref<2x24xi32, #tpu.memory_space<smem>>
    %c2_i32 = arith.constant 2 : i32
    %c0_i32_6 = arith.constant 0 : i32
    %20 = tpu.memref_slice %arg3[%19, %c0_i32_6] : memref<64x32xf32, #tpu.memory_space<any>> -> memref<1x32xf32, #tpu.memory_space<any>>
    %c10_i32 = arith.constant 10 : i32
    %c0_i32_7 = arith.constant 0 : i32
    %21 = tpu.memref_slice %arg4[%arg0, %c10_i32, %c0_i32_7] : memref<2x32x32xf32, #tpu.memory_space<any>> -> memref<1x1x32xf32, #tpu.memory_space<any>>
    %22 = tpu.memref_squeeze %21 : memref<1x1x32xf32, #tpu.memory_space<any>> -> memref<1x32xf32, #tpu.memory_space<any>>
    %23 = tpu.memref_slice %arg5[%c2_i32] : memref<17x!tpu.dma_semaphore, #tpu.memory_space<semaphore_mem>> -> memref<1x!tpu.dma_semaphore, #tpu.memory_space<semaphore_mem>>
    %24 = tpu.memref_squeeze %23 : memref<1x!tpu.dma_semaphore, #tpu.memory_space<semaphore_mem>> -> memref<!tpu.dma_semaphore, #tpu.memory_space<semaphore_mem>>
    tpu.enqueue_dma source(%20 : memref<1x32xf32, #tpu.memory_space<any>>) target(%22 : memref<1x32xf32, #tpu.memory_space<any>>) target_semaphore(%24 : memref<!tpu.dma_semaphore, #tpu.memory_space<semaphore_mem>>)
    %25 = arith.index_cast %arg0 : i32 to index
    %c3 = arith.constant 3 : index
    %26 = memref.load %arg1[%25, %c3] : memref<2x24xi32, #tpu.memory_space<smem>>
    %c3_i32 = arith.constant 3 : i32
    %c0_i32_8 = arith.constant 0 : i32
    %27 = tpu.memref_slice %arg3[%26, %c0_i32_8] : memref<64x32xf32, #tpu.memory_space<any>> -> memref<1x32xf32, #tpu.memory_space<any>>
    %c11_i32 = arith.constant 11 : i32
    %c0_i32_9 = arith.constant 0 : i32
    %28 = tpu.memref_slice %arg4[%arg0, %c11_i32, %c0_i32_9] : memref<2x32x32xf32, #tpu.memory_space<any>> -> memref<1x1x32xf32, #tpu.memory_space<any>>
    %29 = tpu.memref_squeeze %28 : memref<1x1x32xf32, #tpu.memory_space<any>> -> memref<1x32xf32, #tpu.memory_space<any>>
    %30 = tpu.memref_slice %arg5[%c3_i32] : memref<17x!tpu.dma_semaphore, #tpu.memory_space<semaphore_mem>> -> memref<1x!tpu.dma_semaphore, #tpu.memory_space<semaphore_mem>>
    %31 = tpu.memref_squeeze %30 : memref<1x!tpu.dma_semaphore, #tpu.memory_space<semaphore_mem>> -> memref<!tpu.dma_semaphore, #tpu.memory_space<semaphore_mem>>
    tpu.enqueue_dma source(%27 : memref<1x32xf32, #tpu.memory_space<any>>) target(%29 : memref<1x32xf32, #tpu.memory_space<any>>) target_semaphore(%31 : memref<!tpu.dma_semaphore, #tpu.memory_space<semaphore_mem>>)
    %32 = arith.index_cast %arg0 : i32 to index
    %c4 = arith.constant 4 : index
    %33 = memref.load %arg1[%32, %c4] : memref<2x24xi32, #tpu.memory_space<smem>>
    %c4_i32 = arith.constant 4 : i32
    %c0_i32_10 = arith.constant 0 : i32
    %34 = tpu.memref_slice %arg3[%33, %c0_i32_10] : memref<64x32xf32, #tpu.memory_space<any>> -> memref<1x32xf32, #tpu.memory_space<any>>
    %c12_i32 = arith.constant 12 : i32
    %c0_i32_11 = arith.constant 0 : i32
    %35 = tpu.memref_slice %arg4[%arg0, %c12_i32, %c0_i32_11] : memref<2x32x32xf32, #tpu.memory_space<any>> -> memref<1x1x32xf32, #tpu.memory_space<any>>
    %36 = tpu.memref_squeeze %35 : memref<1x1x32xf32, #tpu.memory_space<any>> -> memref<1x32xf32, #tpu.memory_space<any>>
    %37 = tpu.memref_slice %arg5[%c4_i32] : memref<17x!tpu.dma_semaphore, #tpu.memory_space<semaphore_mem>> -> memref<1x!tpu.dma_semaphore, #tpu.memory_space<semaphore_mem>>
    %38 = tpu.memref_squeeze %37 : memref<1x!tpu.dma_semaphore, #tpu.memory_space<semaphore_mem>> -> memref<!tpu.dma_semaphore, #tpu.memory_space<semaphore_mem>>
    tpu.enqueue_dma source(%34 : memref<1x32xf32, #tpu.memory_space<any>>) target(%36 : memref<1x32xf32, #tpu.memory_space<any>>) target_semaphore(%38 : memref<!tpu.dma_semaphore, #tpu.memory_space<semaphore_mem>>)
    %39 = arith.index_cast %arg0 : i32 to index
    %c5 = arith.constant 5 : index
    %40 = memref.load %arg1[%39, %c5] : memref<2x24xi32, #tpu.memory_space<smem>>
    %c5_i32 = arith.constant 5 : i32
    %c0_i32_12 = arith.constant 0 : i32
    %41 = tpu.memref_slice %arg3[%40, %c0_i32_12] : memref<64x32xf32, #tpu.memory_space<any>> -> memref<1x32xf32, #tpu.memory_space<any>>
    %c13_i32 = arith.constant 13 : i32
    %c0_i32_13 = arith.constant 0 : i32
    %42 = tpu.memref_slice %arg4[%arg0, %c13_i32, %c0_i32_13] : memref<2x32x32xf32, #tpu.memory_space<any>> -> memref<1x1x32xf32, #tpu.memory_space<any>>
    %43 = tpu.memref_squeeze %42 : memref<1x1x32xf32, #tpu.memory_space<any>> -> memref<1x32xf32, #tpu.memory_space<any>>
    %44 = tpu.memref_slice %arg5[%c5_i32] : memref<17x!tpu.dma_semaphore, #tpu.memory_space<semaphore_mem>> -> memref<1x!tpu.dma_semaphore, #tpu.memory_space<semaphore_mem>>
    %45 = tpu.memref_squeeze %44 : memref<1x!tpu.dma_semaphore, #tpu.memory_space<semaphore_mem>> -> memref<!tpu.dma_semaphore, #tpu.memory_space<semaphore_mem>>
    tpu.enqueue_dma source(%41 : memref<1x32xf32, #tpu.memory_space<any>>) target(%43 : memref<1x32xf32, #tpu.memory_space<any>>) target_semaphore(%45 : memref<!tpu.dma_semaphore, #tpu.memory_space<semaphore_mem>>)
    %46 = arith.index_cast %arg0 : i32 to index
    %c6 = arith.constant 6 : index
    %47 = memref.load %arg1[%46, %c6] : memref<2x24xi32, #tpu.memory_space<smem>>
    %c6_i32 = arith.constant 6 : i32
    %c0_i32_14 = arith.constant 0 : i32
    %48 = tpu.memref_slice %arg3[%47, %c0_i32_14] : memref<64x32xf32, #tpu.memory_space<any>> -> memref<1x32xf32, #tpu.memory_space<any>>
    %c14_i32 = arith.constant 14 : i32
    %c0_i32_15 = arith.constant 0 : i32
    %49 = tpu.memref_slice %arg4[%arg0, %c14_i32, %c0_i32_15] : memref<2x32x32xf32, #tpu.memory_space<any>> -> memref<1x1x32xf32, #tpu.memory_space<any>>
    %50 = tpu.memref_squeeze %49 : memref<1x1x32xf32, #tpu.memory_space<any>> -> memref<1x32xf32, #tpu.memory_space<any>>
    %51 = tpu.memref_slice %arg5[%c6_i32] : memref<17x!tpu.dma_semaphore, #tpu.memory_space<semaphore_mem>> -> memref<1x!tpu.dma_semaphore, #tpu.memory_space<semaphore_mem>>
    %52 = tpu.memref_squeeze %51 : memref<1x!tpu.dma_semaphore, #tpu.memory_space<semaphore_mem>> -> memref<!tpu.dma_semaphore, #tpu.memory_space<semaphore_mem>>
    tpu.enqueue_dma source(%48 : memref<1x32xf32, #tpu.memory_space<any>>) target(%50 : memref<1x32xf32, #tpu.memory_space<any>>) target_semaphore(%52 : memref<!tpu.dma_semaphore, #tpu.memory_space<semaphore_mem>>)
    %53 = arith.index_cast %arg0 : i32 to index
    %c7 = arith.constant 7 : index
    %54 = memref.load %arg1[%53, %c7] : memref<2x24xi32, #tpu.memory_space<smem>>
    %c7_i32 = arith.constant 7 : i32
    %c0_i32_16 = arith.constant 0 : i32
    %55 = tpu.memref_slice %arg3[%54, %c0_i32_16] : memref<64x32xf32, #tpu.memory_space<any>> -> memref<1x32xf32, #tpu.memory_space<any>>
    %c15_i32 = arith.constant 15 : i32
    %c0_i32_17 = arith.constant 0 : i32
    %56 = tpu.memref_slice %arg4[%arg0, %c15_i32, %c0_i32_17] : memref<2x32x32xf32, #tpu.memory_space<any>> -> memref<1x1x32xf32, #tpu.memory_space<any>>
    %57 = tpu.memref_squeeze %56 : memref<1x1x32xf32, #tpu.memory_space<any>> -> memref<1x32xf32, #tpu.memory_space<any>>
    %58 = tpu.memref_slice %arg5[%c7_i32] : memref<17x!tpu.dma_semaphore, #tpu.memory_space<semaphore_mem>> -> memref<1x!tpu.dma_semaphore, #tpu.memory_space<semaphore_mem>>
    %59 = tpu.memref_squeeze %58 : memref<1x!tpu.dma_semaphore, #tpu.memory_space<semaphore_mem>> -> memref<!tpu.dma_semaphore, #tpu.memory_space<semaphore_mem>>
    tpu.enqueue_dma source(%55 : memref<1x32xf32, #tpu.memory_space<any>>) target(%57 : memref<1x32xf32, #tpu.memory_space<any>>) target_semaphore(%59 : memref<!tpu.dma_semaphore, #tpu.memory_space<semaphore_mem>>)
    %60 = arith.index_cast %arg0 : i32 to index
    %c8 = arith.constant 8 : index
    %61 = memref.load %arg1[%60, %c8] : memref<2x24xi32, #tpu.memory_space<smem>>
    %c8_i32_18 = arith.constant 8 : i32
    %c0_i32_19 = arith.constant 0 : i32
    %62 = tpu.memref_slice %arg3[%61, %c0_i32_19] : memref<64x32xf32, #tpu.memory_space<any>> -> memref<1x32xf32, #tpu.memory_space<any>>
    %c16_i32_20 = arith.constant 16 : i32
    %c0_i32_21 = arith.constant 0 : i32
    %63 = tpu.memref_slice %arg4[%arg0, %c16_i32_20, %c0_i32_21] : memref<2x32x32xf32, #tpu.memory_space<any>> -> memref<1x1x32xf32, #tpu.memory_space<any>>
    %64 = tpu.memref_squeeze %63 : memref<1x1x32xf32, #tpu.memory_space<any>> -> memref<1x32xf32, #tpu.memory_space<any>>
    %65 = tpu.memref_slice %arg5[%c8_i32_18] : memref<17x!tpu.dma_semaphore, #tpu.memory_space<semaphore_mem>> -> memref<1x!tpu.dma_semaphore, #tpu.memory_space<semaphore_mem>>
    %66 = tpu.memref_squeeze %65 : memref<1x!tpu.dma_semaphore, #tpu.memory_space<semaphore_mem>> -> memref<!tpu.dma_semaphore, #tpu.memory_space<semaphore_mem>>
    tpu.enqueue_dma source(%62 : memref<1x32xf32, #tpu.memory_space<any>>) target(%64 : memref<1x32xf32, #tpu.memory_space<any>>) target_semaphore(%66 : memref<!tpu.dma_semaphore, #tpu.memory_space<semaphore_mem>>)
    %67 = arith.index_cast %arg0 : i32 to index
    %c9 = arith.constant 9 : index
    %68 = memref.load %arg1[%67, %c9] : memref<2x24xi32, #tpu.memory_space<smem>>
    %c9_i32_22 = arith.constant 9 : i32
    %c0_i32_23 = arith.constant 0 : i32
    %69 = tpu.memref_slice %arg3[%68, %c0_i32_23] : memref<64x32xf32, #tpu.memory_space<any>> -> memref<1x32xf32, #tpu.memory_space<any>>
    %c17_i32 = arith.constant 17 : i32
    %c0_i32_24 = arith.constant 0 : i32
    %70 = tpu.memref_slice %arg4[%arg0, %c17_i32, %c0_i32_24] : memref<2x32x32xf32, #tpu.memory_space<any>> -> memref<1x1x32xf32, #tpu.memory_space<any>>
    %71 = tpu.memref_squeeze %70 : memref<1x1x32xf32, #tpu.memory_space<any>> -> memref<1x32xf32, #tpu.memory_space<any>>
    %72 = tpu.memref_slice %arg5[%c9_i32_22] : memref<17x!tpu.dma_semaphore, #tpu.memory_space<semaphore_mem>> -> memref<1x!tpu.dma_semaphore, #tpu.memory_space<semaphore_mem>>
    %73 = tpu.memref_squeeze %72 : memref<1x!tpu.dma_semaphore, #tpu.memory_space<semaphore_mem>> -> memref<!tpu.dma_semaphore, #tpu.memory_space<semaphore_mem>>
    tpu.enqueue_dma source(%69 : memref<1x32xf32, #tpu.memory_space<any>>) target(%71 : memref<1x32xf32, #tpu.memory_space<any>>) target_semaphore(%73 : memref<!tpu.dma_semaphore, #tpu.memory_space<semaphore_mem>>)
    %74 = arith.index_cast %arg0 : i32 to index
    %c10 = arith.constant 10 : index
    %75 = memref.load %arg1[%74, %c10] : memref<2x24xi32, #tpu.memory_space<smem>>
    %c10_i32_25 = arith.constant 10 : i32
    %c0_i32_26 = arith.constant 0 : i32
    %76 = tpu.memref_slice %arg3[%75, %c0_i32_26] : memref<64x32xf32, #tpu.memory_space<any>> -> memref<1x32xf32, #tpu.memory_space<any>>
    %c18_i32 = arith.constant 18 : i32
    %c0_i32_27 = arith.constant 0 : i32
    %77 = tpu.memref_slice %arg4[%arg0, %c18_i32, %c0_i32_27] : memref<2x32x32xf32, #tpu.memory_space<any>> -> memref<1x1x32xf32, #tpu.memory_space<any>>
    %78 = tpu.memref_squeeze %77 : memref<1x1x32xf32, #tpu.memory_space<any>> -> memref<1x32xf32, #tpu.memory_space<any>>
    %79 = tpu.memref_slice %arg5[%c10_i32_25] : memref<17x!tpu.dma_semaphore, #tpu.memory_space<semaphore_mem>> -> memref<1x!tpu.dma_semaphore, #tpu.memory_space<semaphore_mem>>
    %80 = tpu.memref_squeeze %79 : memref<1x!tpu.dma_semaphore, #tpu.memory_space<semaphore_mem>> -> memref<!tpu.dma_semaphore, #tpu.memory_space<semaphore_mem>>
    tpu.enqueue_dma source(%76 : memref<1x32xf32, #tpu.memory_space<any>>) target(%78 : memref<1x32xf32, #tpu.memory_space<any>>) target_semaphore(%80 : memref<!tpu.dma_semaphore, #tpu.memory_space<semaphore_mem>>)
    %81 = arith.index_cast %arg0 : i32 to index
    %c11 = arith.constant 11 : index
    %82 = memref.load %arg1[%81, %c11] : memref<2x24xi32, #tpu.memory_space<smem>>
    %c11_i32_28 = arith.constant 11 : i32
    %c0_i32_29 = arith.constant 0 : i32
    %83 = tpu.memref_slice %arg3[%82, %c0_i32_29] : memref<64x32xf32, #tpu.memory_space<any>> -> memref<1x32xf32, #tpu.memory_space<any>>
    %c19_i32 = arith.constant 19 : i32
    %c0_i32_30 = arith.constant 0 : i32
    %84 = tpu.memref_slice %arg4[%arg0, %c19_i32, %c0_i32_30] : memref<2x32x32xf32, #tpu.memory_space<any>> -> memref<1x1x32xf32, #tpu.memory_space<any>>
    %85 = tpu.memref_squeeze %84 : memref<1x1x32xf32, #tpu.memory_space<any>> -> memref<1x32xf32, #tpu.memory_space<any>>
    %86 = tpu.memref_slice %arg5[%c11_i32_28] : memref<17x!tpu.dma_semaphore, #tpu.memory_space<semaphore_mem>> -> memref<1x!tpu.dma_semaphore, #tpu.memory_space<semaphore_mem>>
    %87 = tpu.memref_squeeze %86 : memref<1x!tpu.dma_semaphore, #tpu.memory_space<semaphore_mem>> -> memref<!tpu.dma_semaphore, #tpu.memory_space<semaphore_mem>>
    tpu.enqueue_dma source(%83 : memref<1x32xf32, #tpu.memory_space<any>>) target(%85 : memref<1x32xf32, #tpu.memory_space<any>>) target_semaphore(%87 : memref<!tpu.dma_semaphore, #tpu.memory_space<semaphore_mem>>)
    %88 = arith.index_cast %arg0 : i32 to index
    %c12 = arith.constant 12 : index
    %89 = memref.load %arg1[%88, %c12] : memref<2x24xi32, #tpu.memory_space<smem>>
    %c12_i32_31 = arith.constant 12 : i32
    %c0_i32_32 = arith.constant 0 : i32
    %90 = tpu.memref_slice %arg3[%89, %c0_i32_32] : memref<64x32xf32, #tpu.memory_space<any>> -> memref<1x32xf32, #tpu.memory_space<any>>
    %c20_i32 = arith.constant 20 : i32
    %c0_i32_33 = arith.constant 0 : i32
    %91 = tpu.memref_slice %arg4[%arg0, %c20_i32, %c0_i32_33] : memref<2x32x32xf32, #tpu.memory_space<any>> -> memref<1x1x32xf32, #tpu.memory_space<any>>
    %92 = tpu.memref_squeeze %91 : memref<1x1x32xf32, #tpu.memory_space<any>> -> memref<1x32xf32, #tpu.memory_space<any>>
    %93 = tpu.memref_slice %arg5[%c12_i32_31] : memref<17x!tpu.dma_semaphore, #tpu.memory_space<semaphore_mem>> -> memref<1x!tpu.dma_semaphore, #tpu.memory_space<semaphore_mem>>
    %94 = tpu.memref_squeeze %93 : memref<1x!tpu.dma_semaphore, #tpu.memory_space<semaphore_mem>> -> memref<!tpu.dma_semaphore, #tpu.memory_space<semaphore_mem>>
    tpu.enqueue_dma source(%90 : memref<1x32xf32, #tpu.memory_space<any>>) target(%92 : memref<1x32xf32, #tpu.memory_space<any>>) target_semaphore(%94 : memref<!tpu.dma_semaphore, #tpu.memory_space<semaphore_mem>>)
    %95 = arith.index_cast %arg0 : i32 to index
    %c13 = arith.constant 13 : index
    %96 = memref.load %arg1[%95, %c13] : memref<2x24xi32, #tpu.memory_space<smem>>
    %c13_i32_34 = arith.constant 13 : i32
    %c0_i32_35 = arith.constant 0 : i32
    %97 = tpu.memref_slice %arg3[%96, %c0_i32_35] : memref<64x32xf32, #tpu.memory_space<any>> -> memref<1x32xf32, #tpu.memory_space<any>>
    %c21_i32 = arith.constant 21 : i32
    %c0_i32_36 = arith.constant 0 : i32
    %98 = tpu.memref_slice %arg4[%arg0, %c21_i32, %c0_i32_36] : memref<2x32x32xf32, #tpu.memory_space<any>> -> memref<1x1x32xf32, #tpu.memory_space<any>>
    %99 = tpu.memref_squeeze %98 : memref<1x1x32xf32, #tpu.memory_space<any>> -> memref<1x32xf32, #tpu.memory_space<any>>
    %100 = tpu.memref_slice %arg5[%c13_i32_34] : memref<17x!tpu.dma_semaphore, #tpu.memory_space<semaphore_mem>> -> memref<1x!tpu.dma_semaphore, #tpu.memory_space<semaphore_mem>>
    %101 = tpu.memref_squeeze %100 : memref<1x!tpu.dma_semaphore, #tpu.memory_space<semaphore_mem>> -> memref<!tpu.dma_semaphore, #tpu.memory_space<semaphore_mem>>
    tpu.enqueue_dma source(%97 : memref<1x32xf32, #tpu.memory_space<any>>) target(%99 : memref<1x32xf32, #tpu.memory_space<any>>) target_semaphore(%101 : memref<!tpu.dma_semaphore, #tpu.memory_space<semaphore_mem>>)
    %102 = arith.index_cast %arg0 : i32 to index
    %c14 = arith.constant 14 : index
    %103 = memref.load %arg1[%102, %c14] : memref<2x24xi32, #tpu.memory_space<smem>>
    %c14_i32_37 = arith.constant 14 : i32
    %c0_i32_38 = arith.constant 0 : i32
    %104 = tpu.memref_slice %arg3[%103, %c0_i32_38] : memref<64x32xf32, #tpu.memory_space<any>> -> memref<1x32xf32, #tpu.memory_space<any>>
    %c22_i32 = arith.constant 22 : i32
    %c0_i32_39 = arith.constant 0 : i32
    %105 = tpu.memref_slice %arg4[%arg0, %c22_i32, %c0_i32_39] : memref<2x32x32xf32, #tpu.memory_space<any>> -> memref<1x1x32xf32, #tpu.memory_space<any>>
    %106 = tpu.memref_squeeze %105 : memref<1x1x32xf32, #tpu.memory_space<any>> -> memref<1x32xf32, #tpu.memory_space<any>>
    %107 = tpu.memref_slice %arg5[%c14_i32_37] : memref<17x!tpu.dma_semaphore, #tpu.memory_space<semaphore_mem>> -> memref<1x!tpu.dma_semaphore, #tpu.memory_space<semaphore_mem>>
    %108 = tpu.memref_squeeze %107 : memref<1x!tpu.dma_semaphore, #tpu.memory_space<semaphore_mem>> -> memref<!tpu.dma_semaphore, #tpu.memory_space<semaphore_mem>>
    tpu.enqueue_dma source(%104 : memref<1x32xf32, #tpu.memory_space<any>>) target(%106 : memref<1x32xf32, #tpu.memory_space<any>>) target_semaphore(%108 : memref<!tpu.dma_semaphore, #tpu.memory_space<semaphore_mem>>)
    %109 = arith.index_cast %arg0 : i32 to index
    %c15 = arith.constant 15 : index
    %110 = memref.load %arg1[%109, %c15] : memref<2x24xi32, #tpu.memory_space<smem>>
    %c15_i32_40 = arith.constant 15 : i32
    %c0_i32_41 = arith.constant 0 : i32
    %111 = tpu.memref_slice %arg3[%110, %c0_i32_41] : memref<64x32xf32, #tpu.memory_space<any>> -> memref<1x32xf32, #tpu.memory_space<any>>
    %c23_i32 = arith.constant 23 : i32
    %c0_i32_42 = arith.constant 0 : i32
    %112 = tpu.memref_slice %arg4[%arg0, %c23_i32, %c0_i32_42] : memref<2x32x32xf32, #tpu.memory_space<any>> -> memref<1x1x32xf32, #tpu.memory_space<any>>
    %113 = tpu.memref_squeeze %112 : memref<1x1x32xf32, #tpu.memory_space<any>> -> memref<1x32xf32, #tpu.memory_space<any>>
    %114 = tpu.memref_slice %arg5[%c15_i32_40] : memref<17x!tpu.dma_semaphore, #tpu.memory_space<semaphore_mem>> -> memref<1x!tpu.dma_semaphore, #tpu.memory_space<semaphore_mem>>
    %115 = tpu.memref_squeeze %114 : memref<1x!tpu.dma_semaphore, #tpu.memory_space<semaphore_mem>> -> memref<!tpu.dma_semaphore, #tpu.memory_space<semaphore_mem>>
    tpu.enqueue_dma source(%111 : memref<1x32xf32, #tpu.memory_space<any>>) target(%113 : memref<1x32xf32, #tpu.memory_space<any>>) target_semaphore(%115 : memref<!tpu.dma_semaphore, #tpu.memory_space<semaphore_mem>>)
    %c16_i32_43 = arith.constant 16 : i32
    %c15_i32_44 = arith.constant 15 : i32
    %116 = arith.andi %c16_i32_43, %c15_i32_44 : i32
    %c0_i32_45 = arith.constant 0 : i32
    %c0_i32_46 = arith.constant 0 : i32
    %117 = tpu.memref_slice %arg3[%c0_i32_45, %c0_i32_46] : memref<64x32xf32, #tpu.memory_space<any>> -> memref<1x32xf32, #tpu.memory_space<any>>
    %c8_i32_47 = arith.constant 8 : i32
    %c0_i32_48 = arith.constant 0 : i32
    %118 = tpu.memref_slice %arg4[%arg0, %c8_i32_47, %c0_i32_48] : memref<2x32x32xf32, #tpu.memory_space<any>> -> memref<1x1x32xf32, #tpu.memory_space<any>>
    %119 = tpu.memref_squeeze %118 : memref<1x1x32xf32, #tpu.memory_space<any>> -> memref<1x32xf32, #tpu.memory_space<any>>
    %120 = tpu.memref_slice %arg5[%116] : memref<17x!tpu.dma_semaphore, #tpu.memory_space<semaphore_mem>> -> memref<1x!tpu.dma_semaphore, #tpu.memory_space<semaphore_mem>>
    %121 = tpu.memref_squeeze %120 : memref<1x!tpu.dma_semaphore, #tpu.memory_space<semaphore_mem>> -> memref<!tpu.dma_semaphore, #tpu.memory_space<semaphore_mem>>
    tpu.wait_dma2 semaphore(%121 : memref<!tpu.dma_semaphore, #tpu.memory_space<semaphore_mem>>) src(%117 : memref<1x32xf32, #tpu.memory_space<any>>) dst(%119 : memref<1x32xf32, #tpu.memory_space<any>>)
    %122 = arith.index_cast %arg0 : i32 to index
    %123 = arith.index_cast %c16_i32_43 : i32 to index
    %124 = memref.load %arg1[%122, %123] : memref<2x24xi32, #tpu.memory_space<smem>>
    %c8_i32_49 = arith.constant 8 : i32
    %125 = arith.addi %c8_i32_49, %c16_i32_43 : i32
    %c15_i32_50 = arith.constant 15 : i32
    %126 = arith.andi %c16_i32_43, %c15_i32_50 : i32
    %c0_i32_51 = arith.constant 0 : i32
    %127 = tpu.memref_slice %arg3[%124, %c0_i32_51] : memref<64x32xf32, #tpu.memory_space<any>> -> memref<1x32xf32, #tpu.memory_space<any>>
    %c0_i32_52 = arith.constant 0 : i32
    %128 = tpu.memref_slice %arg4[%arg0, %125, %c0_i32_52] : memref<2x32x32xf32, #tpu.memory_space<any>> -> memref<1x1x32xf32, #tpu.memory_space<any>>
    %129 = tpu.memref_squeeze %128 : memref<1x1x32xf32, #tpu.memory_space<any>> -> memref<1x32xf32, #tpu.memory_space<any>>
    %130 = tpu.memref_slice %arg5[%126] : memref<17x!tpu.dma_semaphore, #tpu.memory_space<semaphore_mem>> -> memref<1x!tpu.dma_semaphore, #tpu.memory_space<semaphore_mem>>
    %131 = tpu.memref_squeeze %130 : memref<1x!tpu.dma_semaphore, #tpu.memory_space<semaphore_mem>> -> memref<!tpu.dma_semaphore, #tpu.memory_space<semaphore_mem>>
    tpu.enqueue_dma source(%127 : memref<1x32xf32, #tpu.memory_space<any>>) target(%129 : memref<1x32xf32, #tpu.memory_space<any>>) target_semaphore(%131 : memref<!tpu.dma_semaphore, #tpu.memory_space<semaphore_mem>>)
    %c17_i32_53 = arith.constant 17 : i32
    %c15_i32_54 = arith.constant 15 : i32
    %132 = arith.andi %c17_i32_53, %c15_i32_54 : i32
    %c0_i32_55 = arith.constant 0 : i32
    %c0_i32_56 = arith.constant 0 : i32
    %133 = tpu.memref_slice %arg3[%c0_i32_55, %c0_i32_56] : memref<64x32xf32, #tpu.memory_space<any>> -> memref<1x32xf32, #tpu.memory_space<any>>
    %c8_i32_57 = arith.constant 8 : i32
    %c0_i32_58 = arith.constant 0 : i32
    %134 = tpu.memref_slice %arg4[%arg0, %c8_i32_57, %c0_i32_58] : memref<2x32x32xf32, #tpu.memory_space<any>> -> memref<1x1x32xf32, #tpu.memory_space<any>>
    %135 = tpu.memref_squeeze %134 : memref<1x1x32xf32, #tpu.memory_space<any>> -> memref<1x32xf32, #tpu.memory_space<any>>
    %136 = tpu.memref_slice %arg5[%132] : memref<17x!tpu.dma_semaphore, #tpu.memory_space<semaphore_mem>> -> memref<1x!tpu.dma_semaphore, #tpu.memory_space<semaphore_mem>>
    %137 = tpu.memref_squeeze %136 : memref<1x!tpu.dma_semaphore, #tpu.memory_space<semaphore_mem>> -> memref<!tpu.dma_semaphore, #tpu.memory_space<semaphore_mem>>
    tpu.wait_dma2 semaphore(%137 : memref<!tpu.dma_semaphore, #tpu.memory_space<semaphore_mem>>) src(%133 : memref<1x32xf32, #tpu.memory_space<any>>) dst(%135 : memref<1x32xf32, #tpu.memory_space<any>>)
    %138 = arith.index_cast %arg0 : i32 to index
    %139 = arith.index_cast %c17_i32_53 : i32 to index
    %140 = memref.load %arg1[%138, %139] : memref<2x24xi32, #tpu.memory_space<smem>>
    %c8_i32_59 = arith.constant 8 : i32
    %141 = arith.addi %c8_i32_59, %c17_i32_53 : i32
    %c15_i32_60 = arith.constant 15 : i32
    %142 = arith.andi %c17_i32_53, %c15_i32_60 : i32
    %c0_i32_61 = arith.constant 0 : i32
    %143 = tpu.memref_slice %arg3[%140, %c0_i32_61] : memref<64x32xf32, #tpu.memory_space<any>> -> memref<1x32xf32, #tpu.memory_space<any>>
    %c0_i32_62 = arith.constant 0 : i32
    %144 = tpu.memref_slice %arg4[%arg0, %141, %c0_i32_62] : memref<2x32x32xf32, #tpu.memory_space<any>> -> memref<1x1x32xf32, #tpu.memory_space<any>>
    %145 = tpu.memref_squeeze %144 : memref<1x1x32xf32, #tpu.memory_space<any>> -> memref<1x32xf32, #tpu.memory_space<any>>
    %146 = tpu.memref_slice %arg5[%142] : memref<17x!tpu.dma_semaphore, #tpu.memory_space<semaphore_mem>> -> memref<1x!tpu.dma_semaphore, #tpu.memory_space<semaphore_mem>>
    %147 = tpu.memref_squeeze %146 : memref<1x!tpu.dma_semaphore, #tpu.memory_space<semaphore_mem>> -> memref<!tpu.dma_semaphore, #tpu.memory_space<semaphore_mem>>
    tpu.enqueue_dma source(%143 : memref<1x32xf32, #tpu.memory_space<any>>) target(%145 : memref<1x32xf32, #tpu.memory_space<any>>) target_semaphore(%147 : memref<!tpu.dma_semaphore, #tpu.memory_space<semaphore_mem>>)
    %c18_i32_63 = arith.constant 18 : i32
    %c15_i32_64 = arith.constant 15 : i32
    %148 = arith.andi %c18_i32_63, %c15_i32_64 : i32
    %c0_i32_65 = arith.constant 0 : i32
    %c0_i32_66 = arith.constant 0 : i32
    %149 = tpu.memref_slice %arg3[%c0_i32_65, %c0_i32_66] : memref<64x32xf32, #tpu.memory_space<any>> -> memref<1x32xf32, #tpu.memory_space<any>>
    %c8_i32_67 = arith.constant 8 : i32
    %c0_i32_68 = arith.constant 0 : i32
    %150 = tpu.memref_slice %arg4[%arg0, %c8_i32_67, %c0_i32_68] : memref<2x32x32xf32, #tpu.memory_space<any>> -> memref<1x1x32xf32, #tpu.memory_space<any>>
    %151 = tpu.memref_squeeze %150 : memref<1x1x32xf32, #tpu.memory_space<any>> -> memref<1x32xf32, #tpu.memory_space<any>>
    %152 = tpu.memref_slice %arg5[%148] : memref<17x!tpu.dma_semaphore, #tpu.memory_space<semaphore_mem>> -> memref<1x!tpu.dma_semaphore, #tpu.memory_space<semaphore_mem>>
    %153 = tpu.memref_squeeze %152 : memref<1x!tpu.dma_semaphore, #tpu.memory_space<semaphore_mem>> -> memref<!tpu.dma_semaphore, #tpu.memory_space<semaphore_mem>>
    tpu.wait_dma2 semaphore(%153 : memref<!tpu.dma_semaphore, #tpu.memory_space<semaphore_mem>>) src(%149 : memref<1x32xf32, #tpu.memory_space<any>>) dst(%151 : memref<1x32xf32, #tpu.memory_space<any>>)
    %154 = arith.index_cast %arg0 : i32 to index
    %155 = arith.index_cast %c18_i32_63 : i32 to index
    %156 = memref.load %arg1[%154, %155] : memref<2x24xi32, #tpu.memory_space<smem>>
    %c8_i32_69 = arith.constant 8 : i32
    %157 = arith.addi %c8_i32_69, %c18_i32_63 : i32
    %c15_i32_70 = arith.constant 15 : i32
    %158 = arith.andi %c18_i32_63, %c15_i32_70 : i32
    %c0_i32_71 = arith.constant 0 : i32
    %159 = tpu.memref_slice %arg3[%156, %c0_i32_71] : memref<64x32xf32, #tpu.memory_space<any>> -> memref<1x32xf32, #tpu.memory_space<any>>
    %c0_i32_72 = arith.constant 0 : i32
    %160 = tpu.memref_slice %arg4[%arg0, %157, %c0_i32_72] : memref<2x32x32xf32, #tpu.memory_space<any>> -> memref<1x1x32xf32, #tpu.memory_space<any>>
    %161 = tpu.memref_squeeze %160 : memref<1x1x32xf32, #tpu.memory_space<any>> -> memref<1x32xf32, #tpu.memory_space<any>>
    %162 = tpu.memref_slice %arg5[%158] : memref<17x!tpu.dma_semaphore, #tpu.memory_space<semaphore_mem>> -> memref<1x!tpu.dma_semaphore, #tpu.memory_space<semaphore_mem>>
    %163 = tpu.memref_squeeze %162 : memref<1x!tpu.dma_semaphore, #tpu.memory_space<semaphore_mem>> -> memref<!tpu.dma_semaphore, #tpu.memory_space<semaphore_mem>>
    tpu.enqueue_dma source(%159 : memref<1x32xf32, #tpu.memory_space<any>>) target(%161 : memref<1x32xf32, #tpu.memory_space<any>>) target_semaphore(%163 : memref<!tpu.dma_semaphore, #tpu.memory_space<semaphore_mem>>)
    %c19_i32_73 = arith.constant 19 : i32
    %c15_i32_74 = arith.constant 15 : i32
    %164 = arith.andi %c19_i32_73, %c15_i32_74 : i32
    %c0_i32_75 = arith.constant 0 : i32
    %c0_i32_76 = arith.constant 0 : i32
    %165 = tpu.memref_slice %arg3[%c0_i32_75, %c0_i32_76] : memref<64x32xf32, #tpu.memory_space<any>> -> memref<1x32xf32, #tpu.memory_space<any>>
    %c8_i32_77 = arith.constant 8 : i32
    %c0_i32_78 = arith.constant 0 : i32
    %166 = tpu.memref_slice %arg4[%arg0, %c8_i32_77, %c0_i32_78] : memref<2x32x32xf32, #tpu.memory_space<any>> -> memref<1x1x32xf32, #tpu.memory_space<any>>
    %167 = tpu.memref_squeeze %166 : memref<1x1x32xf32, #tpu.memory_space<any>> -> memref<1x32xf32, #tpu.memory_space<any>>
    %168 = tpu.memref_slice %arg5[%164] : memref<17x!tpu.dma_semaphore, #tpu.memory_space<semaphore_mem>> -> memref<1x!tpu.dma_semaphore, #tpu.memory_space<semaphore_mem>>
    %169 = tpu.memref_squeeze %168 : memref<1x!tpu.dma_semaphore, #tpu.memory_space<semaphore_mem>> -> memref<!tpu.dma_semaphore, #tpu.memory_space<semaphore_mem>>
    tpu.wait_dma2 semaphore(%169 : memref<!tpu.dma_semaphore, #tpu.memory_space<semaphore_mem>>) src(%165 : memref<1x32xf32, #tpu.memory_space<any>>) dst(%167 : memref<1x32xf32, #tpu.memory_space<any>>)
    %170 = arith.index_cast %arg0 : i32 to index
    %171 = arith.index_cast %c19_i32_73 : i32 to index
    %172 = memref.load %arg1[%170, %171] : memref<2x24xi32, #tpu.memory_space<smem>>
    %c8_i32_79 = arith.constant 8 : i32
    %173 = arith.addi %c8_i32_79, %c19_i32_73 : i32
    %c15_i32_80 = arith.constant 15 : i32
    %174 = arith.andi %c19_i32_73, %c15_i32_80 : i32
    %c0_i32_81 = arith.constant 0 : i32
    %175 = tpu.memref_slice %arg3[%172, %c0_i32_81] : memref<64x32xf32, #tpu.memory_space<any>> -> memref<1x32xf32, #tpu.memory_space<any>>
    %c0_i32_82 = arith.constant 0 : i32
    %176 = tpu.memref_slice %arg4[%arg0, %173, %c0_i32_82] : memref<2x32x32xf32, #tpu.memory_space<any>> -> memref<1x1x32xf32, #tpu.memory_space<any>>
    %177 = tpu.memref_squeeze %176 : memref<1x1x32xf32, #tpu.memory_space<any>> -> memref<1x32xf32, #tpu.memory_space<any>>
    %178 = tpu.memref_slice %arg5[%174] : memref<17x!tpu.dma_semaphore, #tpu.memory_space<semaphore_mem>> -> memref<1x!tpu.dma_semaphore, #tpu.memory_space<semaphore_mem>>
    %179 = tpu.memref_squeeze %178 : memref<1x!tpu.dma_semaphore, #tpu.memory_space<semaphore_mem>> -> memref<!tpu.dma_semaphore, #tpu.memory_space<semaphore_mem>>
    tpu.enqueue_dma source(%175 : memref<1x32xf32, #tpu.memory_space<any>>) target(%177 : memref<1x32xf32, #tpu.memory_space<any>>) target_semaphore(%179 : memref<!tpu.dma_semaphore, #tpu.memory_space<semaphore_mem>>)
    %c20_i32_83 = arith.constant 20 : i32
    %c15_i32_84 = arith.constant 15 : i32
    %180 = arith.andi %c20_i32_83, %c15_i32_84 : i32
    %c0_i32_85 = arith.constant 0 : i32
    %c0_i32_86 = arith.constant 0 : i32
    %181 = tpu.memref_slice %arg3[%c0_i32_85, %c0_i32_86] : memref<64x32xf32, #tpu.memory_space<any>> -> memref<1x32xf32, #tpu.memory_space<any>>
    %c8_i32_87 = arith.constant 8 : i32
    %c0_i32_88 = arith.constant 0 : i32
    %182 = tpu.memref_slice %arg4[%arg0, %c8_i32_87, %c0_i32_88] : memref<2x32x32xf32, #tpu.memory_space<any>> -> memref<1x1x32xf32, #tpu.memory_space<any>>
    %183 = tpu.memref_squeeze %182 : memref<1x1x32xf32, #tpu.memory_space<any>> -> memref<1x32xf32, #tpu.memory_space<any>>
    %184 = tpu.memref_slice %arg5[%180] : memref<17x!tpu.dma_semaphore, #tpu.memory_space<semaphore_mem>> -> memref<1x!tpu.dma_semaphore, #tpu.memory_space<semaphore_mem>>
    %185 = tpu.memref_squeeze %184 : memref<1x!tpu.dma_semaphore, #tpu.memory_space<semaphore_mem>> -> memref<!tpu.dma_semaphore, #tpu.memory_space<semaphore_mem>>
    tpu.wait_dma2 semaphore(%185 : memref<!tpu.dma_semaphore, #tpu.memory_space<semaphore_mem>>) src(%181 : memref<1x32xf32, #tpu.memory_space<any>>) dst(%183 : memref<1x32xf32, #tpu.memory_space<any>>)
    %186 = arith.index_cast %arg0 : i32 to index
    %187 = arith.index_cast %c20_i32_83 : i32 to index
    %188 = memref.load %arg1[%186, %187] : memref<2x24xi32, #tpu.memory_space<smem>>
    %c8_i32_89 = arith.constant 8 : i32
    %189 = arith.addi %c8_i32_89, %c20_i32_83 : i32
    %c15_i32_90 = arith.constant 15 : i32
    %190 = arith.andi %c20_i32_83, %c15_i32_90 : i32
    %c0_i32_91 = arith.constant 0 : i32
    %191 = tpu.memref_slice %arg3[%188, %c0_i32_91] : memref<64x32xf32, #tpu.memory_space<any>> -> memref<1x32xf32, #tpu.memory_space<any>>
    %c0_i32_92 = arith.constant 0 : i32
    %192 = tpu.memref_slice %arg4[%arg0, %189, %c0_i32_92] : memref<2x32x32xf32, #tpu.memory_space<any>> -> memref<1x1x32xf32, #tpu.memory_space<any>>
    %193 = tpu.memref_squeeze %192 : memref<1x1x32xf32, #tpu.memory_space<any>> -> memref<1x32xf32, #tpu.memory_space<any>>
    %194 = tpu.memref_slice %arg5[%190] : memref<17x!tpu.dma_semaphore, #tpu.memory_space<semaphore_mem>> -> memref<1x!tpu.dma_semaphore, #tpu.memory_space<semaphore_mem>>
    %195 = tpu.memref_squeeze %194 : memref<1x!tpu.dma_semaphore, #tpu.memory_space<semaphore_mem>> -> memref<!tpu.dma_semaphore, #tpu.memory_space<semaphore_mem>>
    tpu.enqueue_dma source(%191 : memref<1x32xf32, #tpu.memory_space<any>>) target(%193 : memref<1x32xf32, #tpu.memory_space<any>>) target_semaphore(%195 : memref<!tpu.dma_semaphore, #tpu.memory_space<semaphore_mem>>)
    %c21_i32_93 = arith.constant 21 : i32
    %c15_i32_94 = arith.constant 15 : i32
    %196 = arith.andi %c21_i32_93, %c15_i32_94 : i32
    %c0_i32_95 = arith.constant 0 : i32
    %c0_i32_96 = arith.constant 0 : i32
    %197 = tpu.memref_slice %arg3[%c0_i32_95, %c0_i32_96] : memref<64x32xf32, #tpu.memory_space<any>> -> memref<1x32xf32, #tpu.memory_space<any>>
    %c8_i32_97 = arith.constant 8 : i32
    %c0_i32_98 = arith.constant 0 : i32
    %198 = tpu.memref_slice %arg4[%arg0, %c8_i32_97, %c0_i32_98] : memref<2x32x32xf32, #tpu.memory_space<any>> -> memref<1x1x32xf32, #tpu.memory_space<any>>
    %199 = tpu.memref_squeeze %198 : memref<1x1x32xf32, #tpu.memory_space<any>> -> memref<1x32xf32, #tpu.memory_space<any>>
    %200 = tpu.memref_slice %arg5[%196] : memref<17x!tpu.dma_semaphore, #tpu.memory_space<semaphore_mem>> -> memref<1x!tpu.dma_semaphore, #tpu.memory_space<semaphore_mem>>
    %201 = tpu.memref_squeeze %200 : memref<1x!tpu.dma_semaphore, #tpu.memory_space<semaphore_mem>> -> memref<!tpu.dma_semaphore, #tpu.memory_space<semaphore_mem>>
    tpu.wait_dma2 semaphore(%201 : memref<!tpu.dma_semaphore, #tpu.memory_space<semaphore_mem>>) src(%197 : memref<1x32xf32, #tpu.memory_space<any>>) dst(%199 : memref<1x32xf32, #tpu.memory_space<any>>)
    %202 = arith.index_cast %arg0 : i32 to index
    %203 = arith.index_cast %c21_i32_93 : i32 to index
    %204 = memref.load %arg1[%202, %203] : memref<2x24xi32, #tpu.memory_space<smem>>
    %c8_i32_99 = arith.constant 8 : i32
    %205 = arith.addi %c8_i32_99, %c21_i32_93 : i32
    %c15_i32_100 = arith.constant 15 : i32
    %206 = arith.andi %c21_i32_93, %c15_i32_100 : i32
    %c0_i32_101 = arith.constant 0 : i32
    %207 = tpu.memref_slice %arg3[%204, %c0_i32_101] : memref<64x32xf32, #tpu.memory_space<any>> -> memref<1x32xf32, #tpu.memory_space<any>>
    %c0_i32_102 = arith.constant 0 : i32
    %208 = tpu.memref_slice %arg4[%arg0, %205, %c0_i32_102] : memref<2x32x32xf32, #tpu.memory_space<any>> -> memref<1x1x32xf32, #tpu.memory_space<any>>
    %209 = tpu.memref_squeeze %208 : memref<1x1x32xf32, #tpu.memory_space<any>> -> memref<1x32xf32, #tpu.memory_space<any>>
    %210 = tpu.memref_slice %arg5[%206] : memref<17x!tpu.dma_semaphore, #tpu.memory_space<semaphore_mem>> -> memref<1x!tpu.dma_semaphore, #tpu.memory_space<semaphore_mem>>
    %211 = tpu.memref_squeeze %210 : memref<1x!tpu.dma_semaphore, #tpu.memory_space<semaphore_mem>> -> memref<!tpu.dma_semaphore, #tpu.memory_space<semaphore_mem>>
    tpu.enqueue_dma source(%207 : memref<1x32xf32, #tpu.memory_space<any>>) target(%209 : memref<1x32xf32, #tpu.memory_space<any>>) target_semaphore(%211 : memref<!tpu.dma_semaphore, #tpu.memory_space<semaphore_mem>>)
    %c22_i32_103 = arith.constant 22 : i32
    %c15_i32_104 = arith.constant 15 : i32
    %212 = arith.andi %c22_i32_103, %c15_i32_104 : i32
    %c0_i32_105 = arith.constant 0 : i32
    %c0_i32_106 = arith.constant 0 : i32
    %213 = tpu.memref_slice %arg3[%c0_i32_105, %c0_i32_106] : memref<64x32xf32, #tpu.memory_space<any>> -> memref<1x32xf32, #tpu.memory_space<any>>
    %c8_i32_107 = arith.constant 8 : i32
    %c0_i32_108 = arith.constant 0 : i32
    %214 = tpu.memref_slice %arg4[%arg0, %c8_i32_107, %c0_i32_108] : memref<2x32x32xf32, #tpu.memory_space<any>> -> memref<1x1x32xf32, #tpu.memory_space<any>>
    %215 = tpu.memref_squeeze %214 : memref<1x1x32xf32, #tpu.memory_space<any>> -> memref<1x32xf32, #tpu.memory_space<any>>
    %216 = tpu.memref_slice %arg5[%212] : memref<17x!tpu.dma_semaphore, #tpu.memory_space<semaphore_mem>> -> memref<1x!tpu.dma_semaphore, #tpu.memory_space<semaphore_mem>>
    %217 = tpu.memref_squeeze %216 : memref<1x!tpu.dma_semaphore, #tpu.memory_space<semaphore_mem>> -> memref<!tpu.dma_semaphore, #tpu.memory_space<semaphore_mem>>
    tpu.wait_dma2 semaphore(%217 : memref<!tpu.dma_semaphore, #tpu.memory_space<semaphore_mem>>) src(%213 : memref<1x32xf32, #tpu.memory_space<any>>) dst(%215 : memref<1x32xf32, #tpu.memory_space<any>>)
    %218 = arith.index_cast %arg0 : i32 to index
    %219 = arith.index_cast %c22_i32_103 : i32 to index
    %220 = memref.load %arg1[%218, %219] : memref<2x24xi32, #tpu.memory_space<smem>>
    %c8_i32_109 = arith.constant 8 : i32
    %221 = arith.addi %c8_i32_109, %c22_i32_103 : i32
    %c15_i32_110 = arith.constant 15 : i32
    %222 = arith.andi %c22_i32_103, %c15_i32_110 : i32
    %c0_i32_111 = arith.constant 0 : i32
    %223 = tpu.memref_slice %arg3[%220, %c0_i32_111] : memref<64x32xf32, #tpu.memory_space<any>> -> memref<1x32xf32, #tpu.memory_space<any>>
    %c0_i32_112 = arith.constant 0 : i32
    %224 = tpu.memref_slice %arg4[%arg0, %221, %c0_i32_112] : memref<2x32x32xf32, #tpu.memory_space<any>> -> memref<1x1x32xf32, #tpu.memory_space<any>>
    %225 = tpu.memref_squeeze %224 : memref<1x1x32xf32, #tpu.memory_space<any>> -> memref<1x32xf32, #tpu.memory_space<any>>
    %226 = tpu.memref_slice %arg5[%222] : memref<17x!tpu.dma_semaphore, #tpu.memory_space<semaphore_mem>> -> memref<1x!tpu.dma_semaphore, #tpu.memory_space<semaphore_mem>>
    %227 = tpu.memref_squeeze %226 : memref<1x!tpu.dma_semaphore, #tpu.memory_space<semaphore_mem>> -> memref<!tpu.dma_semaphore, #tpu.memory_space<semaphore_mem>>
    tpu.enqueue_dma source(%223 : memref<1x32xf32, #tpu.memory_space<any>>) target(%225 : memref<1x32xf32, #tpu.memory_space<any>>) target_semaphore(%227 : memref<!tpu.dma_semaphore, #tpu.memory_space<semaphore_mem>>)
    %c23_i32_113 = arith.constant 23 : i32
    %c15_i32_114 = arith.constant 15 : i32
    %228 = arith.andi %c23_i32_113, %c15_i32_114 : i32
    %c0_i32_115 = arith.constant 0 : i32
    %c0_i32_116 = arith.constant 0 : i32
    %229 = tpu.memref_slice %arg3[%c0_i32_115, %c0_i32_116] : memref<64x32xf32, #tpu.memory_space<any>> -> memref<1x32xf32, #tpu.memory_space<any>>
    %c8_i32_117 = arith.constant 8 : i32
    %c0_i32_118 = arith.constant 0 : i32
    %230 = tpu.memref_slice %arg4[%arg0, %c8_i32_117, %c0_i32_118] : memref<2x32x32xf32, #tpu.memory_space<any>> -> memref<1x1x32xf32, #tpu.memory_space<any>>
    %231 = tpu.memref_squeeze %230 : memref<1x1x32xf32, #tpu.memory_space<any>> -> memref<1x32xf32, #tpu.memory_space<any>>
    %232 = tpu.memref_slice %arg5[%228] : memref<17x!tpu.dma_semaphore, #tpu.memory_space<semaphore_mem>> -> memref<1x!tpu.dma_semaphore, #tpu.memory_space<semaphore_mem>>
    %233 = tpu.memref_squeeze %232 : memref<1x!tpu.dma_semaphore, #tpu.memory_space<semaphore_mem>> -> memref<!tpu.dma_semaphore, #tpu.memory_space<semaphore_mem>>
    tpu.wait_dma2 semaphore(%233 : memref<!tpu.dma_semaphore, #tpu.memory_space<semaphore_mem>>) src(%229 : memref<1x32xf32, #tpu.memory_space<any>>) dst(%231 : memref<1x32xf32, #tpu.memory_space<any>>)
    %234 = arith.index_cast %arg0 : i32 to index
    %235 = arith.index_cast %c23_i32_113 : i32 to index
    %236 = memref.load %arg1[%234, %235] : memref<2x24xi32, #tpu.memory_space<smem>>
    %c8_i32_119 = arith.constant 8 : i32
    %237 = arith.addi %c8_i32_119, %c23_i32_113 : i32
    %c15_i32_120 = arith.constant 15 : i32
    %238 = arith.andi %c23_i32_113, %c15_i32_120 : i32
    %c0_i32_121 = arith.constant 0 : i32
    %239 = tpu.memref_slice %arg3[%236, %c0_i32_121] : memref<64x32xf32, #tpu.memory_space<any>> -> memref<1x32xf32, #tpu.memory_space<any>>
    %c0_i32_122 = arith.constant 0 : i32
    %240 = tpu.memref_slice %arg4[%arg0, %237, %c0_i32_122] : memref<2x32x32xf32, #tpu.memory_space<any>> -> memref<1x1x32xf32, #tpu.memory_space<any>>
    %241 = tpu.memref_squeeze %240 : memref<1x1x32xf32, #tpu.memory_space<any>> -> memref<1x32xf32, #tpu.memory_space<any>>
    %242 = tpu.memref_slice %arg5[%238] : memref<17x!tpu.dma_semaphore, #tpu.memory_space<semaphore_mem>> -> memref<1x!tpu.dma_semaphore, #tpu.memory_space<semaphore_mem>>
    %243 = tpu.memref_squeeze %242 : memref<1x!tpu.dma_semaphore, #tpu.memory_space<semaphore_mem>> -> memref<!tpu.dma_semaphore, #tpu.memory_space<semaphore_mem>>
    tpu.enqueue_dma source(%239 : memref<1x32xf32, #tpu.memory_space<any>>) target(%241 : memref<1x32xf32, #tpu.memory_space<any>>) target_semaphore(%243 : memref<!tpu.dma_semaphore, #tpu.memory_space<semaphore_mem>>)
    %c8_i32_123 = arith.constant 8 : i32
    %c8_i32_124 = arith.constant 8 : i32
    %c0_i32_125 = arith.constant 0 : i32
    %c0_i32_126 = arith.constant 0 : i32
    %244 = tpu.memref_slice %arg3[%c0_i32_125, %c0_i32_126] : memref<64x32xf32, #tpu.memory_space<any>> -> memref<1x32xf32, #tpu.memory_space<any>>
    %c8_i32_127 = arith.constant 8 : i32
    %c0_i32_128 = arith.constant 0 : i32
    %245 = tpu.memref_slice %arg4[%arg0, %c8_i32_127, %c0_i32_128] : memref<2x32x32xf32, #tpu.memory_space<any>> -> memref<1x1x32xf32, #tpu.memory_space<any>>
    %246 = tpu.memref_squeeze %245 : memref<1x1x32xf32, #tpu.memory_space<any>> -> memref<1x32xf32, #tpu.memory_space<any>>
    %247 = tpu.memref_slice %arg5[%c8_i32_124] : memref<17x!tpu.dma_semaphore, #tpu.memory_space<semaphore_mem>> -> memref<1x!tpu.dma_semaphore, #tpu.memory_space<semaphore_mem>>
    %248 = tpu.memref_squeeze %247 : memref<1x!tpu.dma_semaphore, #tpu.memory_space<semaphore_mem>> -> memref<!tpu.dma_semaphore, #tpu.memory_space<semaphore_mem>>
    tpu.wait_dma2 semaphore(%248 : memref<!tpu.dma_semaphore, #tpu.memory_space<semaphore_mem>>) src(%244 : memref<1x32xf32, #tpu.memory_space<any>>) dst(%246 : memref<1x32xf32, #tpu.memory_space<any>>)
    %c9_i32_129 = arith.constant 9 : i32
    %c0_i32_130 = arith.constant 0 : i32
    %c0_i32_131 = arith.constant 0 : i32
    %249 = tpu.memref_slice %arg3[%c0_i32_130, %c0_i32_131] : memref<64x32xf32, #tpu.memory_space<any>> -> memref<1x32xf32, #tpu.memory_space<any>>
    %c8_i32_132 = arith.constant 8 : i32
    %c0_i32_133 = arith.constant 0 : i32
    %250 = tpu.memref_slice %arg4[%arg0, %c8_i32_132, %c0_i32_133] : memref<2x32x32xf32, #tpu.memory_space<any>> -> memref<1x1x32xf32, #tpu.memory_space<any>>
    %251 = tpu.memref_squeeze %250 : memref<1x1x32xf32, #tpu.memory_space<any>> -> memref<1x32xf32, #tpu.memory_space<any>>
    %252 = tpu.memref_slice %arg5[%c9_i32_129] : memref<17x!tpu.dma_semaphore, #tpu.memory_space<semaphore_mem>> -> memref<1x!tpu.dma_semaphore, #tpu.memory_space<semaphore_mem>>
    %253 = tpu.memref_squeeze %252 : memref<1x!tpu.dma_semaphore, #tpu.memory_space<semaphore_mem>> -> memref<!tpu.dma_semaphore, #tpu.memory_space<semaphore_mem>>
    tpu.wait_dma2 semaphore(%253 : memref<!tpu.dma_semaphore, #tpu.memory_space<semaphore_mem>>) src(%249 : memref<1x32xf32, #tpu.memory_space<any>>) dst(%251 : memref<1x32xf32, #tpu.memory_space<any>>)
    %c10_i32_134 = arith.constant 10 : i32
    %c0_i32_135 = arith.constant 0 : i32
    %c0_i32_136 = arith.constant 0 : i32
    %254 = tpu.memref_slice %arg3[%c0_i32_135, %c0_i32_136] : memref<64x32xf32, #tpu.memory_space<any>> -> memref<1x32xf32, #tpu.memory_space<any>>
    %c8_i32_137 = arith.constant 8 : i32
    %c0_i32_138 = arith.constant 0 : i32
    %255 = tpu.memref_slice %arg4[%arg0, %c8_i32_137, %c0_i32_138] : memref<2x32x32xf32, #tpu.memory_space<any>> -> memref<1x1x32xf32, #tpu.memory_space<any>>
    %256 = tpu.memref_squeeze %255 : memref<1x1x32xf32, #tpu.memory_space<any>> -> memref<1x32xf32, #tpu.memory_space<any>>
    %257 = tpu.memref_slice %arg5[%c10_i32_134] : memref<17x!tpu.dma_semaphore, #tpu.memory_space<semaphore_mem>> -> memref<1x!tpu.dma_semaphore, #tpu.memory_space<semaphore_mem>>
    %258 = tpu.memref_squeeze %257 : memref<1x!tpu.dma_semaphore, #tpu.memory_space<semaphore_mem>> -> memref<!tpu.dma_semaphore, #tpu.memory_space<semaphore_mem>>
    tpu.wait_dma2 semaphore(%258 : memref<!tpu.dma_semaphore, #tpu.memory_space<semaphore_mem>>) src(%254 : memref<1x32xf32, #tpu.memory_space<any>>) dst(%256 : memref<1x32xf32, #tpu.memory_space<any>>)
    %c11_i32_139 = arith.constant 11 : i32
    %c0_i32_140 = arith.constant 0 : i32
    %c0_i32_141 = arith.constant 0 : i32
    %259 = tpu.memref_slice %arg3[%c0_i32_140, %c0_i32_141] : memref<64x32xf32, #tpu.memory_space<any>> -> memref<1x32xf32, #tpu.memory_space<any>>
    %c8_i32_142 = arith.constant 8 : i32
    %c0_i32_143 = arith.constant 0 : i32
    %260 = tpu.memref_slice %arg4[%arg0, %c8_i32_142, %c0_i32_143] : memref<2x32x32xf32, #tpu.memory_space<any>> -> memref<1x1x32xf32, #tpu.memory_space<any>>
    %261 = tpu.memref_squeeze %260 : memref<1x1x32xf32, #tpu.memory_space<any>> -> memref<1x32xf32, #tpu.memory_space<any>>
    %262 = tpu.memref_slice %arg5[%c11_i32_139] : memref<17x!tpu.dma_semaphore, #tpu.memory_space<semaphore_mem>> -> memref<1x!tpu.dma_semaphore, #tpu.memory_space<semaphore_mem>>
    %263 = tpu.memref_squeeze %262 : memref<1x!tpu.dma_semaphore, #tpu.memory_space<semaphore_mem>> -> memref<!tpu.dma_semaphore, #tpu.memory_space<semaphore_mem>>
    tpu.wait_dma2 semaphore(%263 : memref<!tpu.dma_semaphore, #tpu.memory_space<semaphore_mem>>) src(%259 : memref<1x32xf32, #tpu.memory_space<any>>) dst(%261 : memref<1x32xf32, #tpu.memory_space<any>>)
    %c12_i32_144 = arith.constant 12 : i32
    %c0_i32_145 = arith.constant 0 : i32
    %c0_i32_146 = arith.constant 0 : i32
    %264 = tpu.memref_slice %arg3[%c0_i32_145, %c0_i32_146] : memref<64x32xf32, #tpu.memory_space<any>> -> memref<1x32xf32, #tpu.memory_space<any>>
    %c8_i32_147 = arith.constant 8 : i32
    %c0_i32_148 = arith.constant 0 : i32
    %265 = tpu.memref_slice %arg4[%arg0, %c8_i32_147, %c0_i32_148] : memref<2x32x32xf32, #tpu.memory_space<any>> -> memref<1x1x32xf32, #tpu.memory_space<any>>
    %266 = tpu.memref_squeeze %265 : memref<1x1x32xf32, #tpu.memory_space<any>> -> memref<1x32xf32, #tpu.memory_space<any>>
    %267 = tpu.memref_slice %arg5[%c12_i32_144] : memref<17x!tpu.dma_semaphore, #tpu.memory_space<semaphore_mem>> -> memref<1x!tpu.dma_semaphore, #tpu.memory_space<semaphore_mem>>
    %268 = tpu.memref_squeeze %267 : memref<1x!tpu.dma_semaphore, #tpu.memory_space<semaphore_mem>> -> memref<!tpu.dma_semaphore, #tpu.memory_space<semaphore_mem>>
    tpu.wait_dma2 semaphore(%268 : memref<!tpu.dma_semaphore, #tpu.memory_space<semaphore_mem>>) src(%264 : memref<1x32xf32, #tpu.memory_space<any>>) dst(%266 : memref<1x32xf32, #tpu.memory_space<any>>)
    %c13_i32_149 = arith.constant 13 : i32
    %c0_i32_150 = arith.constant 0 : i32
    %c0_i32_151 = arith.constant 0 : i32
    %269 = tpu.memref_slice %arg3[%c0_i32_150, %c0_i32_151] : memref<64x32xf32, #tpu.memory_space<any>> -> memref<1x32xf32, #tpu.memory_space<any>>
    %c8_i32_152 = arith.constant 8 : i32
    %c0_i32_153 = arith.constant 0 : i32
    %270 = tpu.memref_slice %arg4[%arg0, %c8_i32_152, %c0_i32_153] : memref<2x32x32xf32, #tpu.memory_space<any>> -> memref<1x1x32xf32, #tpu.memory_space<any>>
    %271 = tpu.memref_squeeze %270 : memref<1x1x32xf32, #tpu.memory_space<any>> -> memref<1x32xf32, #tpu.memory_space<any>>
    %272 = tpu.memref_slice %arg5[%c13_i32_149] : memref<17x!tpu.dma_semaphore, #tpu.memory_space<semaphore_mem>> -> memref<1x!tpu.dma_semaphore, #tpu.memory_space<semaphore_mem>>
    %273 = tpu.memref_squeeze %272 : memref<1x!tpu.dma_semaphore, #tpu.memory_space<semaphore_mem>> -> memref<!tpu.dma_semaphore, #tpu.memory_space<semaphore_mem>>
    tpu.wait_dma2 semaphore(%273 : memref<!tpu.dma_semaphore, #tpu.memory_space<semaphore_mem>>) src(%269 : memref<1x32xf32, #tpu.memory_space<any>>) dst(%271 : memref<1x32xf32, #tpu.memory_space<any>>)
    %c14_i32_154 = arith.constant 14 : i32
    %c0_i32_155 = arith.constant 0 : i32
    %c0_i32_156 = arith.constant 0 : i32
    %274 = tpu.memref_slice %arg3[%c0_i32_155, %c0_i32_156] : memref<64x32xf32, #tpu.memory_space<any>> -> memref<1x32xf32, #tpu.memory_space<any>>
    %c8_i32_157 = arith.constant 8 : i32
    %c0_i32_158 = arith.constant 0 : i32
    %275 = tpu.memref_slice %arg4[%arg0, %c8_i32_157, %c0_i32_158] : memref<2x32x32xf32, #tpu.memory_space<any>> -> memref<1x1x32xf32, #tpu.memory_space<any>>
    %276 = tpu.memref_squeeze %275 : memref<1x1x32xf32, #tpu.memory_space<any>> -> memref<1x32xf32, #tpu.memory_space<any>>
    %277 = tpu.memref_slice %arg5[%c14_i32_154] : memref<17x!tpu.dma_semaphore, #tpu.memory_space<semaphore_mem>> -> memref<1x!tpu.dma_semaphore, #tpu.memory_space<semaphore_mem>>
    %278 = tpu.memref_squeeze %277 : memref<1x!tpu.dma_semaphore, #tpu.memory_space<semaphore_mem>> -> memref<!tpu.dma_semaphore, #tpu.memory_space<semaphore_mem>>
    tpu.wait_dma2 semaphore(%278 : memref<!tpu.dma_semaphore, #tpu.memory_space<semaphore_mem>>) src(%274 : memref<1x32xf32, #tpu.memory_space<any>>) dst(%276 : memref<1x32xf32, #tpu.memory_space<any>>)
    %c15_i32_159 = arith.constant 15 : i32
    %c0_i32_160 = arith.constant 0 : i32
    %c0_i32_161 = arith.constant 0 : i32
    %279 = tpu.memref_slice %arg3[%c0_i32_160, %c0_i32_161] : memref<64x32xf32, #tpu.memory_space<any>> -> memref<1x32xf32, #tpu.memory_space<any>>
    %c8_i32_162 = arith.constant 8 : i32
    %c0_i32_163 = arith.constant 0 : i32
    %280 = tpu.memref_slice %arg4[%arg0, %c8_i32_162, %c0_i32_163] : memref<2x32x32xf32, #tpu.memory_space<any>> -> memref<1x1x32xf32, #tpu.memory_space<any>>
    %281 = tpu.memref_squeeze %280 : memref<1x1x32xf32, #tpu.memory_space<any>> -> memref<1x32xf32, #tpu.memory_space<any>>
    %282 = tpu.memref_slice %arg5[%c15_i32_159] : memref<17x!tpu.dma_semaphore, #tpu.memory_space<semaphore_mem>> -> memref<1x!tpu.dma_semaphore, #tpu.memory_space<semaphore_mem>>
    %283 = tpu.memref_squeeze %282 : memref<1x!tpu.dma_semaphore, #tpu.memory_space<semaphore_mem>> -> memref<!tpu.dma_semaphore, #tpu.memory_space<semaphore_mem>>
    tpu.wait_dma2 semaphore(%283 : memref<!tpu.dma_semaphore, #tpu.memory_space<semaphore_mem>>) src(%279 : memref<1x32xf32, #tpu.memory_space<any>>) dst(%281 : memref<1x32xf32, #tpu.memory_space<any>>)
    %c0_i32_164 = arith.constant 0 : i32
    %c0_i32_165 = arith.constant 0 : i32
    %c0_i32_166 = arith.constant 0 : i32
    %284 = tpu.memref_slice %arg3[%c0_i32_165, %c0_i32_166] : memref<64x32xf32, #tpu.memory_space<any>> -> memref<1x32xf32, #tpu.memory_space<any>>
    %c8_i32_167 = arith.constant 8 : i32
    %c0_i32_168 = arith.constant 0 : i32
    %285 = tpu.memref_slice %arg4[%arg0, %c8_i32_167, %c0_i32_168] : memref<2x32x32xf32, #tpu.memory_space<any>> -> memref<1x1x32xf32, #tpu.memory_space<any>>
    %286 = tpu.memref_squeeze %285 : memref<1x1x32xf32, #tpu.memory_space<any>> -> memref<1x32xf32, #tpu.memory_space<any>>
    %287 = tpu.memref_slice %arg5[%c0_i32_164] : memref<17x!tpu.dma_semaphore, #tpu.memory_space<semaphore_mem>> -> memref<1x!tpu.dma_semaphore, #tpu.memory_space<semaphore_mem>>
    %288 = tpu.memref_squeeze %287 : memref<1x!tpu.dma_semaphore, #tpu.memory_space<semaphore_mem>> -> memref<!tpu.dma_semaphore, #tpu.memory_space<semaphore_mem>>
    tpu.wait_dma2 semaphore(%288 : memref<!tpu.dma_semaphore, #tpu.memory_space<semaphore_mem>>) src(%284 : memref<1x32xf32, #tpu.memory_space<any>>) dst(%286 : memref<1x32xf32, #tpu.memory_space<any>>)
    %c1_i32_169 = arith.constant 1 : i32
    %c0_i32_170 = arith.constant 0 : i32
    %c0_i32_171 = arith.constant 0 : i32
    %289 = tpu.memref_slice %arg3[%c0_i32_170, %c0_i32_171] : memref<64x32xf32, #tpu.memory_space<any>> -> memref<1x32xf32, #tpu.memory_space<any>>
    %c8_i32_172 = arith.constant 8 : i32
    %c0_i32_173 = arith.constant 0 : i32
    %290 = tpu.memref_slice %arg4[%arg0, %c8_i32_172, %c0_i32_173] : memref<2x32x32xf32, #tpu.memory_space<any>> -> memref<1x1x32xf32, #tpu.memory_space<any>>
    %291 = tpu.memref_squeeze %290 : memref<1x1x32xf32, #tpu.memory_space<any>> -> memref<1x32xf32, #tpu.memory_space<any>>
    %292 = tpu.memref_slice %arg5[%c1_i32_169] : memref<17x!tpu.dma_semaphore, #tpu.memory_space<semaphore_mem>> -> memref<1x!tpu.dma_semaphore, #tpu.memory_space<semaphore_mem>>
    %293 = tpu.memref_squeeze %292 : memref<1x!tpu.dma_semaphore, #tpu.memory_space<semaphore_mem>> -> memref<!tpu.dma_semaphore, #tpu.memory_space<semaphore_mem>>
    tpu.wait_dma2 semaphore(%293 : memref<!tpu.dma_semaphore, #tpu.memory_space<semaphore_mem>>) src(%289 : memref<1x32xf32, #tpu.memory_space<any>>) dst(%291 : memref<1x32xf32, #tpu.memory_space<any>>)
    %c2_i32_174 = arith.constant 2 : i32
    %c0_i32_175 = arith.constant 0 : i32
    %c0_i32_176 = arith.constant 0 : i32
    %294 = tpu.memref_slice %arg3[%c0_i32_175, %c0_i32_176] : memref<64x32xf32, #tpu.memory_space<any>> -> memref<1x32xf32, #tpu.memory_space<any>>
    %c8_i32_177 = arith.constant 8 : i32
    %c0_i32_178 = arith.constant 0 : i32
    %295 = tpu.memref_slice %arg4[%arg0, %c8_i32_177, %c0_i32_178] : memref<2x32x32xf32, #tpu.memory_space<any>> -> memref<1x1x32xf32, #tpu.memory_space<any>>
    %296 = tpu.memref_squeeze %295 : memref<1x1x32xf32, #tpu.memory_space<any>> -> memref<1x32xf32, #tpu.memory_space<any>>
    %297 = tpu.memref_slice %arg5[%c2_i32_174] : memref<17x!tpu.dma_semaphore, #tpu.memory_space<semaphore_mem>> -> memref<1x!tpu.dma_semaphore, #tpu.memory_space<semaphore_mem>>
    %298 = tpu.memref_squeeze %297 : memref<1x!tpu.dma_semaphore, #tpu.memory_space<semaphore_mem>> -> memref<!tpu.dma_semaphore, #tpu.memory_space<semaphore_mem>>
    tpu.wait_dma2 semaphore(%298 : memref<!tpu.dma_semaphore, #tpu.memory_space<semaphore_mem>>) src(%294 : memref<1x32xf32, #tpu.memory_space<any>>) dst(%296 : memref<1x32xf32, #tpu.memory_space<any>>)
    %c3_i32_179 = arith.constant 3 : i32
    %c0_i32_180 = arith.constant 0 : i32
    %c0_i32_181 = arith.constant 0 : i32
    %299 = tpu.memref_slice %arg3[%c0_i32_180, %c0_i32_181] : memref<64x32xf32, #tpu.memory_space<any>> -> memref<1x32xf32, #tpu.memory_space<any>>
    %c8_i32_182 = arith.constant 8 : i32
    %c0_i32_183 = arith.constant 0 : i32
    %300 = tpu.memref_slice %arg4[%arg0, %c8_i32_182, %c0_i32_183] : memref<2x32x32xf32, #tpu.memory_space<any>> -> memref<1x1x32xf32, #tpu.memory_space<any>>
    %301 = tpu.memref_squeeze %300 : memref<1x1x32xf32, #tpu.memory_space<any>> -> memref<1x32xf32, #tpu.memory_space<any>>
    %302 = tpu.memref_slice %arg5[%c3_i32_179] : memref<17x!tpu.dma_semaphore, #tpu.memory_space<semaphore_mem>> -> memref<1x!tpu.dma_semaphore, #tpu.memory_space<semaphore_mem>>
    %303 = tpu.memref_squeeze %302 : memref<1x!tpu.dma_semaphore, #tpu.memory_space<semaphore_mem>> -> memref<!tpu.dma_semaphore, #tpu.memory_space<semaphore_mem>>
    tpu.wait_dma2 semaphore(%303 : memref<!tpu.dma_semaphore, #tpu.memory_space<semaphore_mem>>) src(%299 : memref<1x32xf32, #tpu.memory_space<any>>) dst(%301 : memref<1x32xf32, #tpu.memory_space<any>>)
    %c4_i32_184 = arith.constant 4 : i32
    %c0_i32_185 = arith.constant 0 : i32
    %c0_i32_186 = arith.constant 0 : i32
    %304 = tpu.memref_slice %arg3[%c0_i32_185, %c0_i32_186] : memref<64x32xf32, #tpu.memory_space<any>> -> memref<1x32xf32, #tpu.memory_space<any>>
    %c8_i32_187 = arith.constant 8 : i32
    %c0_i32_188 = arith.constant 0 : i32
    %305 = tpu.memref_slice %arg4[%arg0, %c8_i32_187, %c0_i32_188] : memref<2x32x32xf32, #tpu.memory_space<any>> -> memref<1x1x32xf32, #tpu.memory_space<any>>
    %306 = tpu.memref_squeeze %305 : memref<1x1x32xf32, #tpu.memory_space<any>> -> memref<1x32xf32, #tpu.memory_space<any>>
    %307 = tpu.memref_slice %arg5[%c4_i32_184] : memref<17x!tpu.dma_semaphore, #tpu.memory_space<semaphore_mem>> -> memref<1x!tpu.dma_semaphore, #tpu.memory_space<semaphore_mem>>
    %308 = tpu.memref_squeeze %307 : memref<1x!tpu.dma_semaphore, #tpu.memory_space<semaphore_mem>> -> memref<!tpu.dma_semaphore, #tpu.memory_space<semaphore_mem>>
    tpu.wait_dma2 semaphore(%308 : memref<!tpu.dma_semaphore, #tpu.memory_space<semaphore_mem>>) src(%304 : memref<1x32xf32, #tpu.memory_space<any>>) dst(%306 : memref<1x32xf32, #tpu.memory_space<any>>)
    %c5_i32_189 = arith.constant 5 : i32
    %c0_i32_190 = arith.constant 0 : i32
    %c0_i32_191 = arith.constant 0 : i32
    %309 = tpu.memref_slice %arg3[%c0_i32_190, %c0_i32_191] : memref<64x32xf32, #tpu.memory_space<any>> -> memref<1x32xf32, #tpu.memory_space<any>>
    %c8_i32_192 = arith.constant 8 : i32
    %c0_i32_193 = arith.constant 0 : i32
    %310 = tpu.memref_slice %arg4[%arg0, %c8_i32_192, %c0_i32_193] : memref<2x32x32xf32, #tpu.memory_space<any>> -> memref<1x1x32xf32, #tpu.memory_space<any>>
    %311 = tpu.memref_squeeze %310 : memref<1x1x32xf32, #tpu.memory_space<any>> -> memref<1x32xf32, #tpu.memory_space<any>>
    %312 = tpu.memref_slice %arg5[%c5_i32_189] : memref<17x!tpu.dma_semaphore, #tpu.memory_space<semaphore_mem>> -> memref<1x!tpu.dma_semaphore, #tpu.memory_space<semaphore_mem>>
    %313 = tpu.memref_squeeze %312 : memref<1x!tpu.dma_semaphore, #tpu.memory_space<semaphore_mem>> -> memref<!tpu.dma_semaphore, #tpu.memory_space<semaphore_mem>>
    tpu.wait_dma2 semaphore(%313 : memref<!tpu.dma_semaphore, #tpu.memory_space<semaphore_mem>>) src(%309 : memref<1x32xf32, #tpu.memory_space<any>>) dst(%311 : memref<1x32xf32, #tpu.memory_space<any>>)
    %c6_i32_194 = arith.constant 6 : i32
    %c0_i32_195 = arith.constant 0 : i32
    %c0_i32_196 = arith.constant 0 : i32
    %314 = tpu.memref_slice %arg3[%c0_i32_195, %c0_i32_196] : memref<64x32xf32, #tpu.memory_space<any>> -> memref<1x32xf32, #tpu.memory_space<any>>
    %c8_i32_197 = arith.constant 8 : i32
    %c0_i32_198 = arith.constant 0 : i32
    %315 = tpu.memref_slice %arg4[%arg0, %c8_i32_197, %c0_i32_198] : memref<2x32x32xf32, #tpu.memory_space<any>> -> memref<1x1x32xf32, #tpu.memory_space<any>>
    %316 = tpu.memref_squeeze %315 : memref<1x1x32xf32, #tpu.memory_space<any>> -> memref<1x32xf32, #tpu.memory_space<any>>
    %317 = tpu.memref_slice %arg5[%c6_i32_194] : memref<17x!tpu.dma_semaphore, #tpu.memory_space<semaphore_mem>> -> memref<1x!tpu.dma_semaphore, #tpu.memory_space<semaphore_mem>>
    %318 = tpu.memref_squeeze %317 : memref<1x!tpu.dma_semaphore, #tpu.memory_space<semaphore_mem>> -> memref<!tpu.dma_semaphore, #tpu.memory_space<semaphore_mem>>
    tpu.wait_dma2 semaphore(%318 : memref<!tpu.dma_semaphore, #tpu.memory_space<semaphore_mem>>) src(%314 : memref<1x32xf32, #tpu.memory_space<any>>) dst(%316 : memref<1x32xf32, #tpu.memory_space<any>>)
    %c7_i32_199 = arith.constant 7 : i32
    %c0_i32_200 = arith.constant 0 : i32
    %c0_i32_201 = arith.constant 0 : i32
    %319 = tpu.memref_slice %arg3[%c0_i32_200, %c0_i32_201] : memref<64x32xf32, #tpu.memory_space<any>> -> memref<1x32xf32, #tpu.memory_space<any>>
    %c8_i32_202 = arith.constant 8 : i32
    %c0_i32_203 = arith.constant 0 : i32
    %320 = tpu.memref_slice %arg4[%arg0, %c8_i32_202, %c0_i32_203] : memref<2x32x32xf32, #tpu.memory_space<any>> -> memref<1x1x32xf32, #tpu.memory_space<any>>
    %321 = tpu.memref_squeeze %320 : memref<1x1x32xf32, #tpu.memory_space<any>> -> memref<1x32xf32, #tpu.memory_space<any>>
    %322 = tpu.memref_slice %arg5[%c7_i32_199] : memref<17x!tpu.dma_semaphore, #tpu.memory_space<semaphore_mem>> -> memref<1x!tpu.dma_semaphore, #tpu.memory_space<semaphore_mem>>
    %323 = tpu.memref_squeeze %322 : memref<1x!tpu.dma_semaphore, #tpu.memory_space<semaphore_mem>> -> memref<!tpu.dma_semaphore, #tpu.memory_space<semaphore_mem>>
    tpu.wait_dma2 semaphore(%323 : memref<!tpu.dma_semaphore, #tpu.memory_space<semaphore_mem>>) src(%319 : memref<1x32xf32, #tpu.memory_space<any>>) dst(%321 : memref<1x32xf32, #tpu.memory_space<any>>)
    %c16_i32_204 = arith.constant 16 : i32
    %c0_i32_205 = arith.constant 0 : i32
    %c0_i32_206 = arith.constant 0 : i32
    %324 = tpu.memref_slice %arg4[%arg0, %c0_i32_205, %c0_i32_206] : memref<2x32x32xf32, #tpu.memory_space<any>> -> memref<1x8x32xf32, #tpu.memory_space<any>>
    %325 = tpu.memref_squeeze %324 : memref<1x8x32xf32, #tpu.memory_space<any>> -> memref<8x32xf32, #tpu.memory_space<any>>
    %326 = tpu.memref_slice %arg5[%c16_i32_204] : memref<17x!tpu.dma_semaphore, #tpu.memory_space<semaphore_mem>> -> memref<1x!tpu.dma_semaphore, #tpu.memory_space<semaphore_mem>>
    %327 = tpu.memref_squeeze %326 : memref<1x!tpu.dma_semaphore, #tpu.memory_space<semaphore_mem>> -> memref<!tpu.dma_semaphore, #tpu.memory_space<semaphore_mem>>
    tpu.wait_dma2 semaphore(%327 : memref<!tpu.dma_semaphore, #tpu.memory_space<semaphore_mem>>) src(%arg2 : memref<8x32xf32, #tpu.memory_space<any>>) dst(%325 : memref<8x32xf32, #tpu.memory_space<any>>)
    return
  }
}

</mosaic_0001>

<llo_original>
// kernel: tpu_custom_call.1
$region0: #{tpu_custom_call.1}
  #allocation0 [shape = 'u32[]', space=smem, size = 0x4, offset = 0x4, fixed_abs, tag = 'smem constant byte address 0x4 - core index']
  #allocation1 [shape = 'u32[72,128]{1,0:T(1,128)}', space=vmem, size = 0x9000, scoped, tag = 'internal scratch']
  #allocation2 [shape = 's32[17]{0}', space=sflag, size = 0x44, scoped, tag = 'scratch operand']
  #allocation3 [shape = 's32[1]{0}', space=sflag, size = 0x4, scoped, tag = 'scoped memory for tpu_custom_call.1']
  #allocation4 [shape = 'u8[1024]{0}', space=smem, size = 0x400, scoped, tag = 'prefetched SMEM operand 0']
  #allocation5 [shape = 's32[]', space=sflag, size = 0x4, offset = 0, fixed_abs, tag = 'sflag constant byte address 0x0 - dummy sync flag']
  #allocation6 [shape = 's32[]', space=sflag, size = 0x4, offset = 0, fixed_abs, tag = 'sflag constant byte address 0x0 - dummy sync flag']
  #allocation7 [shape = 'u32[]', space=smem, size = 0x4, offset = 0x44, fixed_abs, tag = 'smem constant byte address 0x44 - assertion arg 0']
  #allocation8 [shape = 'u32[]', space=smem, size = 0x4, offset = 0x48, fixed_abs, tag = 'smem constant byte address 0x48 - assertion arg 1']
  #allocation9 [shape = 's32[]', space=sflag, size = 0x4, offset = 0, fixed_abs, tag = 'sflag constant byte address 0x0 - dummy sync flag']
  #allocation10 [shape = 's32[]', space=sflag, size = 0x4, offset = 0, fixed_abs, tag = 'sflag constant byte address 0x0 - dummy sync flag']
  #allocation11 [shape = 's32[]', space=sflag, size = 0x4, offset = 0, fixed_abs, tag = 'sflag constant byte address 0x0 - dummy sync flag']
  #allocation12 [shape = 's32[]', space=sflag, size = 0x4, offset = 0, fixed_abs, tag = 'sflag constant byte address 0x0 - dummy sync flag']
  #allocation13 [shape = 's32[]', space=sflag, size = 0x4, offset = 0, fixed_abs, tag = 'sflag constant byte address 0x0 - dummy sync flag']
  #allocation14 [shape = 's32[]', space=sflag, size = 0x4, offset = 0, fixed_abs, tag = 'sflag constant byte address 0x0 - dummy sync flag']
  #allocation15 [shape = 's32[]', space=sflag, size = 0x4, offset = 0, fixed_abs, tag = 'sflag constant byte address 0x0 - dummy sync flag']
  #allocation16 [shape = 's32[]', space=sflag, size = 0x4, offset = 0, fixed_abs, tag = 'sflag constant byte address 0x0 - dummy sync flag']
  #allocation17 [shape = 's32[]', space=sflag, size = 0x4, offset = 0, fixed_abs, tag = 'sflag constant byte address 0x0 - dummy sync flag']
  #allocation18 [shape = 's32[]', space=sflag, size = 0x4, offset = 0, fixed_abs, tag = 'sflag constant byte address 0x0 - dummy sync flag']
  #allocation19 [shape = 's32[]', space=sflag, size = 0x4, offset = 0, fixed_abs, tag = 'sflag constant byte address 0x0 - dummy sync flag']
  #allocation20 [shape = 's32[]', space=sflag, size = 0x4, offset = 0, fixed_abs, tag = 'sflag constant byte address 0x0 - dummy sync flag']
  #allocation21 [shape = 's32[]', space=sflag, size = 0x4, offset = 0, fixed_abs, tag = 'sflag constant byte address 0x0 - dummy sync flag']
  #allocation22 [shape = 's32[]', space=sflag, size = 0x4, offset = 0, fixed_abs, tag = 'sflag constant byte address 0x0 - dummy sync flag']
  #allocation23 [shape = 's32[]', space=sflag, size = 0x4, offset = 0, fixed_abs, tag = 'sflag constant byte address 0x0 - dummy sync flag']
  #allocation24 [shape = 's32[]', space=sflag, size = 0x4, offset = 0, fixed_abs, tag = 'sflag constant byte address 0x0 - dummy sync flag']
  #allocation25 [shape = 's32[]', space=sflag, size = 0x4, offset = 0, fixed_abs, tag = 'sflag constant byte address 0x0 - dummy sync flag']
  #allocation26 [shape = 's32[]', space=sflag, size = 0x4, offset = 0, fixed_abs, tag = 'sflag constant byte address 0x0 - dummy sync flag']
  #allocation27 [shape = 's32[]', space=sflag, size = 0x4, offset = 0, fixed_abs, tag = 'sflag constant byte address 0x0 - dummy sync flag']
  #allocation28 [shape = 's32[]', space=sflag, size = 0x4, offset = 0, fixed_abs, tag = 'sflag constant byte address 0x0 - dummy sync flag']
  #allocation29 [shape = 's32[]', space=sflag, size = 0x4, offset = 0, fixed_abs, tag = 'sflag constant byte address 0x0 - dummy sync flag']
  #allocation30 [shape = 's32[]', space=sflag, size = 0x4, offset = 0, fixed_abs, tag = 'sflag constant byte address 0x0 - dummy sync flag']
  #allocation31 [shape = 's32[]', space=sflag, size = 0x4, offset = 0, fixed_abs, tag = 'sflag constant byte address 0x0 - dummy sync flag']
  #allocation32 [shape = 's32[]', space=sflag, size = 0x4, offset = 0, fixed_abs, tag = 'sflag constant byte address 0x0 - dummy sync flag']
  #allocation33 [shape = 's32[]', space=sflag, size = 0x4, offset = 0, fixed_abs, tag = 'sflag constant byte address 0x0 - dummy sync flag']
  #allocation34 [shape = 's32[]', space=sflag, size = 0x4, offset = 0, fixed_abs, tag = 'sflag constant byte address 0x0 - dummy sync flag']
  #allocation35 [shape = 's32[]', space=sflag, size = 0x4, offset = 0, fixed_abs, tag = 'sflag constant byte address 0x0 - dummy sync flag']
  #allocation36 [shape = 's32[]', space=sflag, size = 0x4, offset = 0, fixed_abs, tag = 'sflag constant byte address 0x0 - dummy sync flag']
  #allocation37 [shape = 's32[]', space=sflag, size = 0x4, offset = 0, fixed_abs, tag = 'sflag constant byte address 0x0 - dummy sync flag']
  #allocation38 [shape = 's32[]', space=sflag, size = 0x4, offset = 0, fixed_abs, tag = 'sflag constant byte address 0x0 - dummy sync flag']
  #allocation39 [shape = 's32[]', space=sflag, size = 0x4, offset = 0, fixed_abs, tag = 'sflag constant byte address 0x0 - dummy sync flag']
  #allocation40 [shape = 's32[]', space=sflag, size = 0x4, offset = 0, fixed_abs, tag = 'sflag constant byte address 0x0 - dummy sync flag']
  #allocation41 [shape = 's32[]', space=sflag, size = 0x4, offset = 0, fixed_abs, tag = 'sflag constant byte address 0x0 - dummy sync flag']
  #allocation42 [shape = 's32[]', space=sflag, size = 0x4, offset = 0, fixed_abs, tag = 'sflag constant byte address 0x0 - dummy sync flag']
  #allocation43 [shape = 's32[]', space=sflag, size = 0x4, offset = 0, fixed_abs, tag = 'sflag constant byte address 0x0 - dummy sync flag']
  #allocation44 [shape = 's32[]', space=sflag, size = 0x4, offset = 0, fixed_abs, tag = 'sflag constant byte address 0x0 - dummy sync flag']
  #allocation45 [shape = 's32[]', space=sflag, size = 0x4, offset = 0, fixed_abs, tag = 'sflag constant byte address 0x0 - dummy sync flag']
  #allocation46 [shape = 's32[]', space=sflag, size = 0x4, offset = 0, fixed_abs, tag = 'sflag constant byte address 0x0 - dummy sync flag']
  #allocation47 [shape = 's32[]', space=sflag, size = 0x4, offset = 0, fixed_abs, tag = 'sflag constant byte address 0x0 - dummy sync flag']
  #allocation48 [shape = 's32[]', space=sflag, size = 0x4, offset = 0, fixed_abs, tag = 'sflag constant byte address 0x0 - dummy sync flag']
  #allocation49 [shape = 's32[]', space=sflag, size = 0x4, offset = 0, fixed_abs, tag = 'sflag constant byte address 0x0 - dummy sync flag']
  #allocation50 [shape = 's32[]', space=sflag, size = 0x4, offset = 0, fixed_abs, tag = 'sflag constant byte address 0x0 - dummy sync flag']
  #allocation51 [shape = 's32[]', space=sflag, size = 0x4, offset = 0, fixed_abs, tag = 'sflag constant byte address 0x0 - dummy sync flag']
  #allocation52 [shape = 's32[]', space=sflag, size = 0x4, offset = 0, fixed_abs, tag = 'sflag constant byte address 0x0 - dummy sync flag']
  #allocation53 [shape = 's32[]', space=sflag, size = 0x4, offset = 0, fixed_abs, tag = 'sflag constant byte address 0x0 - dummy sync flag']
  #allocation54 [shape = 's32[]', space=sflag, size = 0x4, offset = 0, fixed_abs, tag = 'sflag constant byte address 0x0 - dummy sync flag']
  #allocation55 [shape = 's32[]', space=sflag, size = 0x4, offset = 0, fixed_abs, tag = 'sflag constant byte address 0x0 - dummy sync flag']
  #allocation56 [shape = 's32[]', space=sflag, size = 0x4, offset = 0, fixed_abs, tag = 'sflag constant byte address 0x0 - dummy sync flag']
  %s0 = inlined_call_operand.vmem [shape: s32[2,24], index: 0, kind: input, shape index: {}]
  %s1 = inlined_call_operand.vmem [shape: f32[8,32], index: 1, kind: input, shape index: {}]
  %s2 = inlined_call_operand.vmem [shape: f32[64,32], index: 2, kind: input, shape index: {}]
  %s3 = inlined_call_operand.hbm [shape: f32[2,32,32], index: 3, kind: output, shape index: {}]
  %s4 = sld [smem:[#allocation0]]
  $region109: #{tpu_custom_call.1} parent=0
    _
  %s6 = ssub.s32 1, %s4
  %s7 = scalar_select 0, %s6, %s4
  %s9 = sshll.u32 %s0, 4
  %s10 = int_to_ptr.vmem [resolvable:$true] %s9
  %12 = dma.vmem_to_smem %s10, 32, [#allocation4], [#allocation3]
  %14 = dma.done [#allocation3], 32
  %15 = sfence
  loop: start=0, step=1, limit=2
  $region2: #{tpu_custom_call.1} parent=0 // loop_pre_header
    _
  $region3: #{tpu_custom_call.1} parent=0 // loop_header
    %s17 = sphi 0, %s21
    %p18 = scmp.ge.s32.totalorder %s17, 2
  $region4: #{tpu_custom_call.1} parent=0 // loop_header_branch
    %20 = sbr.rel (%p18) target = $region8
  $region5: #{tpu_custom_call.1} parent=0 // loop_body
    %s22 = sadd.s32 %s17, 1
    %s23 = smul.u32 %s17, 32
    %s24 = scalar_lea.hbm %s3, %s23
    %s25 = scalar_lea.sflag [#allocation2], 16
    // Predicated region
    $region9: #{tpu_custom_call.1} parent=5 // pred_check
      _
    $region10: #{tpu_custom_call.1} parent=5 // pred_check_branch
      %27 = sbr.rel target = $region12
    $region11: #{tpu_custom_call.1} parent=5 // pred_region
      %28 = sst [smem:[#allocation7]] [#allocation6]
      %29 = sst [smem:[#allocation8]] [#allocation5]
    $region12: #{tpu_custom_call.1} parent=5 // pred_fallthru
      _
    %31 = shalt.err (0)
    %s33 = sshll.u32 %s1, 4
    %s34 = int_to_ptr.vmem [resolvable:$true] %s33
    %s35 = sshll.u32 %s24, 4
    %s36 = int_to_ptr.hbm [resolvable:$true] %s35
    %38 = dma.vmem_to_hbm [thread:$0]  %s34, 128, %s36, %s25
    %s39 = smul.u32 %s17, 128
    %s40 = sld [smem:[#allocation4 + %s39]]
    %s41 = scalar_lea.vmem %s2, %s40
    %s42 = sadd.s32 8, %s23
    %s43 = scalar_lea.hbm %s3, %s42
    // Predicated region
    $region13: #{tpu_custom_call.1} parent=5 // pred_check
      _
    $region14: #{tpu_custom_call.1} parent=5 // pred_check_branch
      %45 = sbr.rel target = $region16
    $region15: #{tpu_custom_call.1} parent=5 // pred_region
      %46 = sst [smem:[#allocation7]] [#allocation10]
      %47 = sst [smem:[#allocation8]] [#allocation9]
    $region16: #{tpu_custom_call.1} parent=5 // pred_fallthru
      _
    %49 = shalt.err (0)
    %s51 = sshll.u32 %s41, 4
    %s52 = int_to_ptr.vmem [resolvable:$true] %s51
    %s53 = sshll.u32 %s43, 4
    %s54 = int_to_ptr.hbm [resolvable:$true] %s53
    %56 = dma.vmem_to_hbm [thread:$0]  %s52, 16, %s54, [#allocation2]
    %s57 = sadd.s32 %s39, 1
    %s58 = sld [smem:[#allocation4 + %s57]]
    %s59 = scalar_lea.vmem %s2, %s58
    %s60 = sadd.s32 9, %s23
    %s61 = scalar_lea.hbm %s3, %s60
    %s62 = scalar_lea.sflag [#allocation2], 1
    // Predicated region
    $region17: #{tpu_custom_call.1} parent=5 // pred_check
      _
    $region18: #{tpu_custom_call.1} parent=5 // pred_check_branch
      %64 = sbr.rel target = $region20
    $region19: #{tpu_custom_call.1} parent=5 // pred_region
      %65 = sst [smem:[#allocation7]] [#allocation12]
      %66 = sst [smem:[#allocation8]] [#allocation11]
    $region20: #{tpu_custom_call.1} parent=5 // pred_fallthru
      _
    %68 = shalt.err (0)
    %s70 = sshll.u32 %s59, 4
    %s71 = int_to_ptr.vmem [resolvable:$true] %s70
    %s72 = sshll.u32 %s61, 4
    %s73 = int_to_ptr.hbm [resolvable:$true] %s72
    %75 = dma.vmem_to_hbm [thread:$0]  %s71, 16, %s73, %s62
    %s76 = sadd.s32 %s39, 2
    %s77 = sld [smem:[#allocation4 + %s76]]
    %s78 = scalar_lea.vmem %s2, %s77
    %s79 = sadd.s32 10, %s23
    %s80 = scalar_lea.hbm %s3, %s79
    %s81 = scalar_lea.sflag [#allocation2], 2
    // Predicated region
    $region21: #{tpu_custom_call.1} parent=5 // pred_check
      _
    $region22: #{tpu_custom_call.1} parent=5 // pred_check_branch
      %83 = sbr.rel target = $region24
    $region23: #{tpu_custom_call.1} parent=5 // pred_region
      %84 = sst [smem:[#allocation7]] [#allocation14]
      %85 = sst [smem:[#allocation8]] [#allocation13]
    $region24: #{tpu_custom_call.1} parent=5 // pred_fallthru
      _
    %87 = shalt.err (0)
    %s89 = sshll.u32 %s78, 4
    %s90 = int_to_ptr.vmem [resolvable:$true] %s89
    %s91 = sshll.u32 %s80, 4
    %s92 = int_to_ptr.hbm [resolvable:$true] %s91
    %94 = dma.vmem_to_hbm [thread:$0]  %s90, 16, %s92, %s81
    %s95 = sadd.s32 %s39, 3
    %s96 = sld [smem:[#allocation4 + %s95]]
    %s97 = scalar_lea.vmem %s2, %s96
    %s98 = sadd.s32 11, %s23
    %s99 = scalar_lea.hbm %s3, %s98
    %s100 = scalar_lea.sflag [#allocation2], 3
    // Predicated region
    $region25: #{tpu_custom_call.1} parent=5 // pred_check
      _
    $region26: #{tpu_custom_call.1} parent=5 // pred_check_branch
      %102 = sbr.rel target = $region28
    $region27: #{tpu_custom_call.1} parent=5 // pred_region
      %103 = sst [smem:[#allocation7]] [#allocation16]
      %104 = sst [smem:[#allocation8]] [#allocation15]
    $region28: #{tpu_custom_call.1} parent=5 // pred_fallthru
      _
    %106 = shalt.err (0)
    %s108 = sshll.u32 %s97, 4
    %s109 = int_to_ptr.vmem [resolvable:$true] %s108
    %s110 = sshll.u32 %s99, 4
    %s111 = int_to_ptr.hbm [resolvable:$true] %s110
    %113 = dma.vmem_to_hbm [thread:$0]  %s109, 16, %s111, %s100
    %s114 = sadd.s32 %s39, 4
    %s115 = sld [smem:[#allocation4 + %s114]]
    %s116 = scalar_lea.vmem %s2, %s115
    %s117 = sadd.s32 12, %s23
    %s118 = scalar_lea.hbm %s3, %s117
    %s119 = scalar_lea.sflag [#allocation2], 4
    // Predicated region
    $region29: #{tpu_custom_call.1} parent=5 // pred_check
      _
    $region30: #{tpu_custom_call.1} parent=5 // pred_check_branch
      %121 = sbr.rel target = $region32
    $region31: #{tpu_custom_call.1} parent=5 // pred_region
      %122 = sst [smem:[#allocation7]] [#allocation18]
      %123 = sst [smem:[#allocation8]] [#allocation17]
    $region32: #{tpu_custom_call.1} parent=5 // pred_fallthru
      _
    %125 = shalt.err (0)
    %s127 = sshll.u32 %s116, 4
    %s128 = int_to_ptr.vmem [resolvable:$true] %s127
    %s129 = sshll.u32 %s118, 4
    %s130 = int_to_ptr.hbm [resolvable:$true] %s129
    %132 = dma.vmem_to_hbm [thread:$0]  %s128, 16, %s130, %s119
    %s133 = sadd.s32 %s39, 5
    %s134 = sld [smem:[#allocation4 + %s133]]
    %s135 = scalar_lea.vmem %s2, %s134
    %s136 = sadd.s32 13, %s23
    %s137 = scalar_lea.hbm %s3, %s136
    %s138 = scalar_lea.sflag [#allocation2], 5
    // Predicated region
    $region33: #{tpu_custom_call.1} parent=5 // pred_check
      _
    $region34: #{tpu_custom_call.1} parent=5 // pred_check_branch
      %140 = sbr.rel target = $region36
    $region35: #{tpu_custom_call.1} parent=5 // pred_region
      %141 = sst [smem:[#allocation7]] [#allocation20]
      %142 = sst [smem:[#allocation8]] [#allocation19]
    $region36: #{tpu_custom_call.1} parent=5 // pred_fallthru
      _
    %144 = shalt.err (0)
    %s146 = sshll.u32 %s135, 4
    %s147 = int_to_ptr.vmem [resolvable:$true] %s146
    %s148 = sshll.u32 %s137, 4
    %s149 = int_to_ptr.hbm [resolvable:$true] %s148
    %151 = dma.vmem_to_hbm [thread:$0]  %s147, 16, %s149, %s138
    %s152 = sadd.s32 %s39, 6
    %s153 = sld [smem:[#allocation4 + %s152]]
    %s154 = scalar_lea.vmem %s2, %s153
    %s155 = sadd.s32 14, %s23
    %s156 = scalar_lea.hbm %s3, %s155
    %s157 = scalar_lea.sflag [#allocation2], 6
    // Predicated region
    $region37: #{tpu_custom_call.1} parent=5 // pred_check
      _
    $region38: #{tpu_custom_call.1} parent=5 // pred_check_branch
      %159 = sbr.rel target = $region40
    $region39: #{tpu_custom_call.1} parent=5 // pred_region
      %160 = sst [smem:[#allocation7]] [#allocation22]
      %161 = sst [smem:[#allocation8]] [#allocation21]
    $region40: #{tpu_custom_call.1} parent=5 // pred_fallthru
      _
    %163 = shalt.err (0)
    %s165 = sshll.u32 %s154, 4
    %s166 = int_to_ptr.vmem [resolvable:$true] %s165
    %s167 = sshll.u32 %s156, 4
    %s168 = int_to_ptr.hbm [resolvable:$true] %s167
    %170 = dma.vmem_to_hbm [thread:$0]  %s166, 16, %s168, %s157
    %s171 = sadd.s32 %s39, 7
    %s172 = sld [smem:[#allocation4 + %s171]]
    %s173 = scalar_lea.vmem %s2, %s172
    %s174 = sadd.s32 15, %s23
    %s175 = scalar_lea.hbm %s3, %s174
    %s176 = scalar_lea.sflag [#allocation2], 7
    // Predicated region
    $region41: #{tpu_custom_call.1} parent=5 // pred_check
      _
    $region42: #{tpu_custom_call.1} parent=5 // pred_check_branch
      %178 = sbr.rel target = $region44
    $region43: #{tpu_custom_call.1} parent=5 // pred_region
      %179 = sst [smem:[#allocation7]] [#allocation24]
      %180 = sst [smem:[#allocation8]] [#allocation23]
    $region44: #{tpu_custom_call.1} parent=5 // pred_fallthru
      _
    %182 = shalt.err (0)
    %s184 = sshll.u32 %s173, 4
    %s185 = int_to_ptr.vmem [resolvable:$true] %s184
    %s186 = sshll.u32 %s175, 4
    %s187 = int_to_ptr.hbm [resolvable:$true] %s186
    %189 = dma.vmem_to_hbm [thread:$0]  %s185, 16, %s187, %s176
    %s190 = sadd.s32 %s39, 8
    %s191 = sld [smem:[#allocation4 + %s190]]
    %s192 = scalar_lea.vmem %s2, %s191
    %s193 = sadd.s32 16, %s23
    %s194 = scalar_lea.hbm %s3, %s193
    %s195 = scalar_lea.sflag [#allocation2], 8
    // Predicated region
    $region45: #{tpu_custom_call.1} parent=5 // pred_check
      _
    $region46: #{tpu_custom_call.1} parent=5 // pred_check_branch
      %197 = sbr.rel target = $region48
    $region47: #{tpu_custom_call.1} parent=5 // pred_region
      %198 = sst [smem:[#allocation7]] [#allocation26]
      %199 = sst [smem:[#allocation8]] [#allocation25]
    $region48: #{tpu_custom_call.1} parent=5 // pred_fallthru
      _
    %201 = shalt.err (0)
    %s203 = sshll.u32 %s192, 4
    %s204 = int_to_ptr.vmem [resolvable:$true] %s203
    %s205 = sshll.u32 %s194, 4
    %s206 = int_to_ptr.hbm [resolvable:$true] %s205
    %208 = dma.vmem_to_hbm [thread:$0]  %s204, 16, %s206, %s195
    %s209 = sadd.s32 %s39, 9
    %s210 = sld [smem:[#allocation4 + %s209]]
    %s211 = scalar_lea.vmem %s2, %s210
    %s212 = sadd.s32 17, %s23
    %s213 = scalar_lea.hbm %s3, %s212
    %s214 = scalar_lea.sflag [#allocation2], 9
    // Predicated region
    $region49: #{tpu_custom_call.1} parent=5 // pred_check
      _
    $region50: #{tpu_custom_call.1} parent=5 // pred_check_branch
      %216 = sbr.rel target = $region52
    $region51: #{tpu_custom_call.1} parent=5 // pred_region
      %217 = sst [smem:[#allocation7]] [#allocation28]
      %218 = sst [smem:[#allocation8]] [#allocation27]
    $region52: #{tpu_custom_call.1} parent=5 // pred_fallthru
      _
    %220 = shalt.err (0)
    %s222 = sshll.u32 %s211, 4
    %s223 = int_to_ptr.vmem [resolvable:$true] %s222
    %s224 = sshll.u32 %s213, 4
    %s225 = int_to_ptr.hbm [resolvable:$true] %s224
    %227 = dma.vmem_to_hbm [thread:$0]  %s223, 16, %s225, %s214
    %s228 = sadd.s32 %s39, 10
    %s229 = sld [smem:[#allocation4 + %s228]]
    %s230 = scalar_lea.vmem %s2, %s229
    %s231 = sadd.s32 18, %s23
    %s232 = scalar_lea.hbm %s3, %s231
    %s233 = scalar_lea.sflag [#allocation2], 10
    // Predicated region
    $region53: #{tpu_custom_call.1} parent=5 // pred_check
      _
    $region54: #{tpu_custom_call.1} parent=5 // pred_check_branch
      %235 = sbr.rel target = $region56
    $region55: #{tpu_custom_call.1} parent=5 // pred_region
      %236 = sst [smem:[#allocation7]] [#allocation30]
      %237 = sst [smem:[#allocation8]] [#allocation29]
    $region56: #{tpu_custom_call.1} parent=5 // pred_fallthru
      _
    %239 = shalt.err (0)
    %s241 = sshll.u32 %s230, 4
    %s242 = int_to_ptr.vmem [resolvable:$true] %s241
    %s243 = sshll.u32 %s232, 4
    %s244 = int_to_ptr.hbm [resolvable:$true] %s243
    %246 = dma.vmem_to_hbm [thread:$0]  %s242, 16, %s244, %s233
    %s247 = sadd.s32 %s39, 11
    %s248 = sld [smem:[#allocation4 + %s247]]
    %s249 = scalar_lea.vmem %s2, %s248
    %s250 = sadd.s32 19, %s23
    %s251 = scalar_lea.hbm %s3, %s250
    %s252 = scalar_lea.sflag [#allocation2], 11
    // Predicated region
    $region57: #{tpu_custom_call.1} parent=5 // pred_check
      _
    $region58: #{tpu_custom_call.1} parent=5 // pred_check_branch
      %254 = sbr.rel target = $region60
    $region59: #{tpu_custom_call.1} parent=5 // pred_region
      %255 = sst [smem:[#allocation7]] [#allocation32]
      %256 = sst [smem:[#allocation8]] [#allocation31]
    $region60: #{tpu_custom_call.1} parent=5 // pred_fallthru
      _
    %258 = shalt.err (0)
    %s260 = sshll.u32 %s249, 4
    %s261 = int_to_ptr.vmem [resolvable:$true] %s260
    %s262 = sshll.u32 %s251, 4
    %s263 = int_to_ptr.hbm [resolvable:$true] %s262
    %265 = dma.vmem_to_hbm [thread:$0]  %s261, 16, %s263, %s252
    %s266 = sadd.s32 %s39, 12
    %s267 = sld [smem:[#allocation4 + %s266]]
    %s268 = scalar_lea.vmem %s2, %s267
    %s269 = sadd.s32 20, %s23
    %s270 = scalar_lea.hbm %s3, %s269
    %s271 = scalar_lea.sflag [#allocation2], 12
    // Predicated region
    $region61: #{tpu_custom_call.1} parent=5 // pred_check
      _
    $region62: #{tpu_custom_call.1} parent=5 // pred_check_branch
      %273 = sbr.rel target = $region64
    $region63: #{tpu_custom_call.1} parent=5 // pred_region
      %274 = sst [smem:[#allocation7]] [#allocation34]
      %275 = sst [smem:[#allocation8]] [#allocation33]
    $region64: #{tpu_custom_call.1} parent=5 // pred_fallthru
      _
    %277 = shalt.err (0)
    %s279 = sshll.u32 %s268, 4
    %s280 = int_to_ptr.vmem [resolvable:$true] %s279
    %s281 = sshll.u32 %s270, 4
    %s282 = int_to_ptr.hbm [resolvable:$true] %s281
    %284 = dma.vmem_to_hbm [thread:$0]  %s280, 16, %s282, %s271
    %s285 = sadd.s32 %s39, 13
    %s286 = sld [smem:[#allocation4 + %s285]]
    %s287 = scalar_lea.vmem %s2, %s286
    %s288 = sadd.s32 21, %s23
    %s289 = scalar_lea.hbm %s3, %s288
    %s290 = scalar_lea.sflag [#allocation2], 13
    // Predicated region
    $region65: #{tpu_custom_call.1} parent=5 // pred_check
      _
    $region66: #{tpu_custom_call.1} parent=5 // pred_check_branch
      %292 = sbr.rel target = $region68
    $region67: #{tpu_custom_call.1} parent=5 // pred_region
      %293 = sst [smem:[#allocation7]] [#allocation36]
      %294 = sst [smem:[#allocation8]] [#allocation35]
    $region68: #{tpu_custom_call.1} parent=5 // pred_fallthru
      _
    %296 = shalt.err (0)
    %s298 = sshll.u32 %s287, 4
    %s299 = int_to_ptr.vmem [resolvable:$true] %s298
    %s300 = sshll.u32 %s289, 4
    %s301 = int_to_ptr.hbm [resolvable:$true] %s300
    %303 = dma.vmem_to_hbm [thread:$0]  %s299, 16, %s301, %s290
    %s304 = sadd.s32 %s39, 14
    %s305 = sld [smem:[#allocation4 + %s304]]
    %s306 = scalar_lea.vmem %s2, %s305
    %s307 = sadd.s32 22, %s23
    %s308 = scalar_lea.hbm %s3, %s307
    %s309 = scalar_lea.sflag [#allocation2], 14
    // Predicated region
    $region69: #{tpu_custom_call.1} parent=5 // pred_check
      _
    $region70: #{tpu_custom_call.1} parent=5 // pred_check_branch
      %311 = sbr.rel target = $region72
    $region71: #{tpu_custom_call.1} parent=5 // pred_region
      %312 = sst [smem:[#allocation7]] [#allocation38]
      %313 = sst [smem:[#allocation8]] [#allocation37]
    $region72: #{tpu_custom_call.1} parent=5 // pred_fallthru
      _
    %315 = shalt.err (0)
    %s317 = sshll.u32 %s306, 4
    %s318 = int_to_ptr.vmem [resolvable:$true] %s317
    %s319 = sshll.u32 %s308, 4
    %s320 = int_to_ptr.hbm [resolvable:$true] %s319
    %322 = dma.vmem_to_hbm [thread:$0]  %s318, 16, %s320, %s309
    %s323 = sadd.s32 %s39, 15
    %s324 = sld [smem:[#allocation4 + %s323]]
    %s325 = scalar_lea.vmem %s2, %s324
    %s326 = sadd.s32 23, %s23
    %s327 = scalar_lea.hbm %s3, %s326
    %s328 = scalar_lea.sflag [#allocation2], 15
    // Predicated region
    $region73: #{tpu_custom_call.1} parent=5 // pred_check
      _
    $region74: #{tpu_custom_call.1} parent=5 // pred_check_branch
      %330 = sbr.rel target = $region76
    $region75: #{tpu_custom_call.1} parent=5 // pred_region
      %331 = sst [smem:[#allocation7]] [#allocation40]
      %332 = sst [smem:[#allocation8]] [#allocation39]
    $region76: #{tpu_custom_call.1} parent=5 // pred_fallthru
      _
    %334 = shalt.err (0)
    %s336 = sshll.u32 %s325, 4
    %s337 = int_to_ptr.vmem [resolvable:$true] %s336
    %s338 = sshll.u32 %s327, 4
    %s339 = int_to_ptr.hbm [resolvable:$true] %s338
    %341 = dma.vmem_to_hbm [thread:$0]  %s337, 16, %s339, %s328
    %s342 = smul.u32 1, 1
    %s343 = sshll.u32 %s342, 4
    %344 = dma.done [#allocation2], %s343
    %s345 = sadd.s32 %s39, 16
    %s346 = sld [smem:[#allocation4 + %s345]]
    %s347 = scalar_lea.vmem %s2, %s346
    %s348 = sadd.s32 24, %s23
    %s349 = scalar_lea.hbm %s3, %s348
    // Predicated region
    $region77: #{tpu_custom_call.1} parent=5 // pred_check
      _
    $region78: #{tpu_custom_call.1} parent=5 // pred_check_branch
      %351 = sbr.rel target = $region80
    $region79: #{tpu_custom_call.1} parent=5 // pred_region
      %352 = sst [smem:[#allocation7]] [#allocation42]
      %353 = sst [smem:[#allocation8]] [#allocation41]
    $region80: #{tpu_custom_call.1} parent=5 // pred_fallthru
      _
    %355 = shalt.err (0)
    %s357 = sshll.u32 %s347, 4
    %s358 = int_to_ptr.vmem [resolvable:$true] %s357
    %s359 = sshll.u32 %s349, 4
    %s360 = int_to_ptr.hbm [resolvable:$true] %s359
    %362 = dma.vmem_to_hbm [thread:$0]  %s358, 16, %s360, [#allocation2]
    %s363 = sshll.u32 %s342, 4
    %364 = dma.done %s62, %s363
    %s365 = sadd.s32 %s39, 17
    %s366 = sld [smem:[#allocation4 + %s365]]
    %s367 = scalar_lea.vmem %s2, %s366
    %s368 = sadd.s32 25, %s23
    %s369 = scalar_lea.hbm %s3, %s368
    // Predicated region
    $region81: #{tpu_custom_call.1} parent=5 // pred_check
      _
    $region82: #{tpu_custom_call.1} parent=5 // pred_check_branch
      %371 = sbr.rel target = $region84
    $region83: #{tpu_custom_call.1} parent=5 // pred_region
      %372 = sst [smem:[#allocation7]] [#allocation44]
      %373 = sst [smem:[#allocation8]] [#allocation43]
    $region84: #{tpu_custom_call.1} parent=5 // pred_fallthru
      _
    %375 = shalt.err (0)
    %s377 = sshll.u32 %s367, 4
    %s378 = int_to_ptr.vmem [resolvable:$true] %s377
    %s379 = sshll.u32 %s369, 4
    %s380 = int_to_ptr.hbm [resolvable:$true] %s379
    %382 = dma.vmem_to_hbm [thread:$0]  %s378, 16, %s380, %s62
    %s383 = sshll.u32 %s342, 4
    %384 = dma.done %s81, %s383
    %s385 = sadd.s32 %s39, 18
    %s386 = sld [smem:[#allocation4 + %s385]]
    %s387 = scalar_lea.vmem %s2, %s386
    %s388 = sadd.s32 26, %s23
    %s389 = scalar_lea.hbm %s3, %s388
    // Predicated region
    $region85: #{tpu_custom_call.1} parent=5 // pred_check
      _
    $region86: #{tpu_custom_call.1} parent=5 // pred_check_branch
      %391 = sbr.rel target = $region88
    $region87: #{tpu_custom_call.1} parent=5 // pred_region
      %392 = sst [smem:[#allocation7]] [#allocation46]
      %393 = sst [smem:[#allocation8]] [#allocation45]
    $region88: #{tpu_custom_call.1} parent=5 // pred_fallthru
      _
    %395 = shalt.err (0)
    %s397 = sshll.u32 %s387, 4
    %s398 = int_to_ptr.vmem [resolvable:$true] %s397
    %s399 = sshll.u32 %s389, 4
    %s400 = int_to_ptr.hbm [resolvable:$true] %s399
    %402 = dma.vmem_to_hbm [thread:$0]  %s398, 16, %s400, %s81
    %s403 = sshll.u32 %s342, 4
    %404 = dma.done %s100, %s403
    %s405 = sadd.s32 %s39, 19
    %s406 = sld [smem:[#allocation4 + %s405]]
    %s407 = scalar_lea.vmem %s2, %s406
    %s408 = sadd.s32 27, %s23
    %s409 = scalar_lea.hbm %s3, %s408
    // Predicated region
    $region89: #{tpu_custom_call.1} parent=5 // pred_check
      _
    $region90: #{tpu_custom_call.1} parent=5 // pred_check_branch
      %411 = sbr.rel target = $region92
    $region91: #{tpu_custom_call.1} parent=5 // pred_region
      %412 = sst [smem:[#allocation7]] [#allocation48]
      %413 = sst [smem:[#allocation8]] [#allocation47]
    $region92: #{tpu_custom_call.1} parent=5 // pred_fallthru
      _
    %415 = shalt.err (0)
    %s417 = sshll.u32 %s407, 4
    %s418 = int_to_ptr.vmem [resolvable:$true] %s417
    %s419 = sshll.u32 %s409, 4
    %s420 = int_to_ptr.hbm [resolvable:$true] %s419
    %422 = dma.vmem_to_hbm [thread:$0]  %s418, 16, %s420, %s100
    %s423 = sshll.u32 %s342, 4
    %424 = dma.done %s119, %s423
    %s425 = sadd.s32 %s39, 20
    %s426 = sld [smem:[#allocation4 + %s425]]
    %s427 = scalar_lea.vmem %s2, %s426
    %s428 = sadd.s32 28, %s23
    %s429 = scalar_lea.hbm %s3, %s428
    // Predicated region
    $region93: #{tpu_custom_call.1} parent=5 // pred_check
      _
    $region94: #{tpu_custom_call.1} parent=5 // pred_check_branch
      %431 = sbr.rel target = $region96
    $region95: #{tpu_custom_call.1} parent=5 // pred_region
      %432 = sst [smem:[#allocation7]] [#allocation50]
      %433 = sst [smem:[#allocation8]] [#allocation49]
    $region96: #{tpu_custom_call.1} parent=5 // pred_fallthru
      _
    %435 = shalt.err (0)
    %s437 = sshll.u32 %s427, 4
    %s438 = int_to_ptr.vmem [resolvable:$true] %s437
    %s439 = sshll.u32 %s429, 4
    %s440 = int_to_ptr.hbm [resolvable:$true] %s439
    %442 = dma.vmem_to_hbm [thread:$0]  %s438, 16, %s440, %s119
    %s443 = sshll.u32 %s342, 4
    %444 = dma.done %s138, %s443
    %s445 = sadd.s32 %s39, 21
    %s446 = sld [smem:[#allocation4 + %s445]]
    %s447 = scalar_lea.vmem %s2, %s446
    %s448 = sadd.s32 29, %s23
    %s449 = scalar_lea.hbm %s3, %s448
    // Predicated region
    $region97: #{tpu_custom_call.1} parent=5 // pred_check
      _
    $region98: #{tpu_custom_call.1} parent=5 // pred_check_branch
      %451 = sbr.rel target = $region100
    $region99: #{tpu_custom_call.1} parent=5 // pred_region
      %452 = sst [smem:[#allocation7]] [#allocation52]
      %453 = sst [smem:[#allocation8]] [#allocation51]
    $region100: #{tpu_custom_call.1} parent=5 // pred_fallthru
      _
    %455 = shalt.err (0)
    %s457 = sshll.u32 %s447, 4
    %s458 = int_to_ptr.vmem [resolvable:$true] %s457
    %s459 = sshll.u32 %s449, 4
    %s460 = int_to_ptr.hbm [resolvable:$true] %s459
    %462 = dma.vmem_to_hbm [thread:$0]  %s458, 16, %s460, %s138
    %s463 = sshll.u32 %s342, 4
    %464 = dma.done %s157, %s463
    %s465 = sadd.s32 %s39, 22
    %s466 = sld [smem:[#allocation4 + %s465]]
    %s467 = scalar_lea.vmem %s2, %s466
    %s468 = sadd.s32 30, %s23
    %s469 = scalar_lea.hbm %s3, %s468
    // Predicated region
    $region101: #{tpu_custom_call.1} parent=5 // pred_check
      _
    $region102: #{tpu_custom_call.1} parent=5 // pred_check_branch
      %471 = sbr.rel target = $region104
    $region103: #{tpu_custom_call.1} parent=5 // pred_region
      %472 = sst [smem:[#allocation7]] [#allocation54]
      %473 = sst [smem:[#allocation8]] [#allocation53]
    $region104: #{tpu_custom_call.1} parent=5 // pred_fallthru
      _
    %475 = shalt.err (0)
    %s477 = sshll.u32 %s467, 4
    %s478 = int_to_ptr.vmem [resolvable:$true] %s477
    %s479 = sshll.u32 %s469, 4
    %s480 = int_to_ptr.hbm [resolvable:$true] %s479
    %482 = dma.vmem_to_hbm [thread:$0]  %s478, 16, %s480, %s157
    %s483 = sshll.u32 %s342, 4
    %484 = dma.done %s176, %s483
    %s485 = sadd.s32 %s39, 23
    %s486 = sld [smem:[#allocation4 + %s485]]
    %s487 = scalar_lea.vmem %s2, %s486
    %s488 = sadd.s32 31, %s23
    %s489 = scalar_lea.hbm %s3, %s488
    // Predicated region
    $region105: #{tpu_custom_call.1} parent=5 // pred_check
      _
    $region106: #{tpu_custom_call.1} parent=5 // pred_check_branch
      %491 = sbr.rel target = $region108
    $region107: #{tpu_custom_call.1} parent=5 // pred_region
      %492 = sst [smem:[#allocation7]] [#allocation56]
      %493 = sst [smem:[#allocation8]] [#allocation55]
    $region108: #{tpu_custom_call.1} parent=5 // pred_fallthru
      _
    %495 = shalt.err (0)
    %s497 = sshll.u32 %s487, 4
    %s498 = int_to_ptr.vmem [resolvable:$true] %s497
    %s499 = sshll.u32 %s489, 4
    %s500 = int_to_ptr.hbm [resolvable:$true] %s499
    %502 = dma.vmem_to_hbm [thread:$0]  %s498, 16, %s500, %s176
    %s503 = sshll.u32 %s342, 4
    %504 = dma.done %s195, %s503
    %s505 = sshll.u32 %s342, 4
    %506 = dma.done %s214, %s505
    %s507 = sshll.u32 %s342, 4
    %508 = dma.done %s233, %s507
    %s509 = sshll.u32 %s342, 4
    %510 = dma.done %s252, %s509
    %s511 = sshll.u32 %s342, 4
    %512 = dma.done %s271, %s511
    %s513 = sshll.u32 %s342, 4
    %514 = dma.done %s290, %s513
    %s515 = sshll.u32 %s342, 4
    %516 = dma.done %s309, %s515
    %s517 = sshll.u32 %s342, 4
    %518 = dma.done %s328, %s517
    %s519 = sshll.u32 %s342, 4
    %520 = dma.done [#allocation2], %s519
    %s521 = sshll.u32 %s342, 4
    %522 = dma.done %s62, %s521
    %s523 = sshll.u32 %s342, 4
    %524 = dma.done %s81, %s523
    %s525 = sshll.u32 %s342, 4
    %526 = dma.done %s100, %s525
    %s527 = sshll.u32 %s342, 4
    %528 = dma.done %s119, %s527
    %s529 = sshll.u32 %s342, 4
    %530 = dma.done %s138, %s529
    %s531 = sshll.u32 %s342, 4
    %532 = dma.done %s157, %s531
    %s533 = sshll.u32 %s342, 4
    %534 = dma.done %s176, %s533
    %s535 = smul.u32 8, 1
    %s536 = sshll.u32 %s535, 4
    %537 = dma.done %s25, %s536
  $region6: #{tpu_custom_call.1} parent=0 // loop_footer
    %s21 = sadd.s32 1, %s17
  $region7: #{tpu_custom_call.1} parent=0 // loop_footer_branch
    %16 = sbr.rel target = $region3
  $region8: #{tpu_custom_call.1} parent=0 // loop_exit
    _
  %538 = vsyncmov [#allocation2]
  %s539 = vpop.sfrf %538
  %p540 = scmp.eq.s32.totalorder %s539, 0
  %p541 = pneg %p540
  %543 = shalt.err (%p541)
  %s544 = scalar_lea.sflag [#allocation2], 1
  %545 = vsyncmov %s544
  %s546 = vpop.sfrf %545
  %p547 = scmp.eq.s32.totalorder %s546, 0
  %p548 = pneg %p547
  %550 = shalt.err (%p548)
  %s551 = scalar_lea.sflag [#allocation2], 2
  %552 = vsyncmov %s551
  %s553 = vpop.sfrf %552
  %p554 = scmp.eq.s32.totalorder %s553, 0
  %p555 = pneg %p554
  %557 = shalt.err (%p555)
  %s558 = scalar_lea.sflag [#allocation2], 3
  %559 = vsyncmov %s558
  %s560 = vpop.sfrf %559
  %p561 = scmp.eq.s32.totalorder %s560, 0
  %p562 = pneg %p561
  %564 = shalt.err (%p562)
  %s565 = scalar_lea.sflag [#allocation2], 4
  %566 = vsyncmov %s565
  %s567 = vpop.sfrf %566
  %p568 = scmp.eq.s32.totalorder %s567, 0
  %p569 = pneg %p568
  %571 = shalt.err (%p569)
  %s572 = scalar_lea.sflag [#allocation2], 5
  %573 = vsyncmov %s572
  %s574 = vpop.sfrf %573
  %p575 = scmp.eq.s32.totalorder %s574, 0
  %p576 = pneg %p575
  %578 = shalt.err (%p576)
  %s579 = scalar_lea.sflag [#allocation2], 6
  %580 = vsyncmov %s579
  %s581 = vpop.sfrf %580
  %p582 = scmp.eq.s32.totalorder %s581, 0
  %p583 = pneg %p582
  %585 = shalt.err (%p583)
  %s586 = scalar_lea.sflag [#allocation2], 7
  %587 = vsyncmov %s586
  %s588 = vpop.sfrf %587
  %p589 = scmp.eq.s32.totalorder %s588, 0
  %p590 = pneg %p589
  %592 = shalt.err (%p590)
  %s593 = scalar_lea.sflag [#allocation2], 8
  %594 = vsyncmov %s593
  %s595 = vpop.sfrf %594
  %p596 = scmp.eq.s32.totalorder %s595, 0
  %p597 = pneg %p596
  %599 = shalt.err (%p597)
  %s600 = scalar_lea.sflag [#allocation2], 9
  %601 = vsyncmov %s600
  %s602 = vpop.sfrf %601
  %p603 = scmp.eq.s32.totalorder %s602, 0
  %p604 = pneg %p603
  %606 = shalt.err (%p604)
  %s607 = scalar_lea.sflag [#allocation2], 10
  %608 = vsyncmov %s607
  %s609 = vpop.sfrf %608
  %p610 = scmp.eq.s32.totalorder %s609, 0
  %p611 = pneg %p610
  %613 = shalt.err (%p611)
  %s614 = scalar_lea.sflag [#allocation2], 11
  %615 = vsyncmov %s614
  %s616 = vpop.sfrf %615
  %p617 = scmp.eq.s32.totalorder %s616, 0
  %p618 = pneg %p617
  %620 = shalt.err (%p618)
  %s621 = scalar_lea.sflag [#allocation2], 12
  %622 = vsyncmov %s621
  %s623 = vpop.sfrf %622
  %p624 = scmp.eq.s32.totalorder %s623, 0
  %p625 = pneg %p624
  %627 = shalt.err (%p625)
  %s628 = scalar_lea.sflag [#allocation2], 13
  %629 = vsyncmov %s628
  %s630 = vpop.sfrf %629
  %p631 = scmp.eq.s32.totalorder %s630, 0
  %p632 = pneg %p631
  %634 = shalt.err (%p632)
  %s635 = scalar_lea.sflag [#allocation2], 14
  %636 = vsyncmov %s635
  %s637 = vpop.sfrf %636
  %p638 = scmp.eq.s32.totalorder %s637, 0
  %p639 = pneg %p638
  %641 = shalt.err (%p639)
  %s642 = scalar_lea.sflag [#allocation2], 15
  %643 = vsyncmov %s642
  %s644 = vpop.sfrf %643
  %p645 = scmp.eq.s32.totalorder %s644, 0
  %p646 = pneg %p645
  %648 = shalt.err (%p646)
  %s649 = scalar_lea.sflag [#allocation2], 16
  %650 = vsyncmov %s649
  %s651 = vpop.sfrf %650
  %p652 = scmp.eq.s32.totalorder %s651, 0
  %p653 = pneg %p652
  %655 = shalt.err (%p653)

</llo_original>
